<compile_context>
chip_gen: v7x
topology: tpu7x:2x2x1
jax: 0.10.0
libtpu: 0.0.40
codegen_flags: <defaults>
</compile_context>

<pallas_src>
import functools

import jax
import jax.numpy as jnp
from jax import lax
from jax.experimental import pallas as pl
from jax.experimental.pallas import tpu as pltpu


def _inverted_residual_kernel(
    x_ref, w1_ref, b1_ref, wdw_ref, b2_ref, w3_ref, b3_ref, o_ref,
    *, use_res: bool, h_img: int, tile_h: int,
):
    # x_ref block: (TH+2, W, Cin) bf16 strip incl. a 1-row halo on each side.
    x = x_ref[...]
    thp2, W, _ = x.shape
    exp = w1_ref.shape[1]
    cout = w3_ref.shape[1]
    th = thp2 - 2

    # ---- 1x1 expand conv (BN scale pre-folded into w1) + bias + ReLU6 (MXU).
    a = jnp.dot(x.reshape(thp2 * W, -1), w1_ref[...],
                preferred_element_type=jnp.float32)
    a = jnp.clip(a + b1_ref[...], 0.0, 6.0).reshape(thp2, W, exp)

    # Halo rows lying outside the image (top/bottom of first/last strip) must
    # contribute *zero* to the depthwise conv (true zero padding), not BN(0).
    row = pl.program_id(1) * tile_h + lax.broadcasted_iota(
        jnp.int32, (thp2, 1, 1), 0)            # row index in padded coords
    a = jnp.where((row >= 1) & (row <= h_img), a, 0.0)

    # ---- 3x3 depthwise conv (BN scale pre-folded into wdw) + bias + ReLU6.
    # W-shifts via XLU roll + boundary mask; H-shifts are cheap leading-axis
    # slices of the haloed strip.
    col = lax.broadcasted_iota(jnp.int32, (1, W, 1), 1)
    a_l = jnp.where(col >= 1, pltpu.roll(a, 1, axis=1), 0.0)          # a[x-1]
    a_r = jnp.where(col <= W - 2, pltpu.roll(a, W - 1, axis=1), 0.0)  # a[x+1]
    w = wdw_ref[...]                                                  # (3,3,exp) f32
    acc = a_l[0:th] * w[0, 0]
    acc += a[0:th] * w[0, 1]
    acc += a_r[0:th] * w[0, 2]
    acc += a_l[1:th + 1] * w[1, 0]
    acc += a[1:th + 1] * w[1, 1]
    acc += a_r[1:th + 1] * w[1, 2]
    acc += a_l[2:th + 2] * w[2, 0]
    acc += a[2:th + 2] * w[2, 1]
    acc += a_r[2:th + 2] * w[2, 2]
    b = jnp.clip(acc + b2_ref[...], 0.0, 6.0)

    # ---- 1x1 project conv (BN scale pre-folded into w3) + bias (MXU).
    c = jnp.dot(b.reshape(th * W, exp).astype(jnp.bfloat16), w3_ref[...],
                preferred_element_type=jnp.float32)
    c = (c + b3_ref[...]).reshape(th, W, cout)

    if use_res:
        c = c + x[1:th + 1].astype(jnp.float32)
    o_ref[...] = c.astype(o_ref.dtype)


def inverted_residual(x_nchw, params, *, use_res: bool, tile_h: int = 8):
    """x_nchw: (N, C_in, H, W) f32 (PyTorch layout). Returns (N, C_out, H, W) f32."""
    w1, b1, wdw, b2, w3, b3 = params
    x = jnp.transpose(x_nchw, (0, 2, 3, 1)).astype(jnp.bfloat16)     # NHWC bf16
    # TODO(synk): in a full network keep activations NHWC/bf16 end-to-end (and
    # consider a lane-dense (H, W*Cout) output slab) instead of transposing at
    # every block boundary.
    N, H, W, cin = x.shape
    exp = w1.shape[1]
    cout = w3.shape[1]

    th = min(tile_h, H)
    assert H % th == 0, "H must be divisible by the H-strip size"
    ht = H // th

    # Zero-pad H by 1 row on each side, then cut overlapping (th+2)-row strips
    # so each grid step has its depthwise halo resident using plain blocked
    # indexing (no data-dependent index_map, always in-bounds).
    xp = jnp.pad(x, ((0, 0), (1, 1), (0, 0), (0, 0)))
    rows = jnp.arange(ht)[:, None] * th + jnp.arange(th + 2)[None, :]
    x_strips = xp[:, rows]                          # (N, ht, th+2, W, cin)

    kernel = functools.partial(_inverted_residual_kernel, use_res=use_res,
                               h_img=H, tile_h=th)

    out = pl.pallas_call(
        kernel,
        out_shape=jax.ShapeDtypeStruct((N, ht, th, W, cout), jnp.bfloat16),
        grid_spec=pltpu.PrefetchScalarGridSpec(
            num_scalar_prefetch=0,
            grid=(N, ht),
            in_specs=[
                pl.BlockSpec((None, None, th + 2, W, cin),
                             lambda n, h: (n, h, 0, 0, 0)),
                pl.BlockSpec((cin, exp), lambda n, h: (0, 0)),
                pl.BlockSpec((1, exp), lambda n, h: (0, 0)),
                pl.BlockSpec((3, 3, exp), lambda n, h: (0, 0, 0)),
                pl.BlockSpec((1, exp), lambda n, h: (0, 0)),
                pl.BlockSpec((exp, cout), lambda n, h: (0, 0)),
                pl.BlockSpec((1, cout), lambda n, h: (0, 0)),
            ],
            out_specs=pl.BlockSpec((None, None, th, W, cout),
                                   lambda n, h: (n, h, 0, 0, 0)),
        ),
        compiler_params=pltpu.CompilerParams(
            dimension_semantics=("parallel", "parallel"),
            vmem_limit_bytes=32 * 1024 * 1024,
        ),
    )(x_strips, w1, b1, wdw, b2, w3, b3)

    out = out.reshape(N, H, W, cout).astype(jnp.float32)
    return jnp.transpose(out, (0, 3, 1, 2))


def _fold_bn(gamma, beta, mean, var, eps=1e-5):
    scale = gamma / jnp.sqrt(var + eps)
    bias = beta - mean * scale
    return scale, bias


def make_params(key, c_in, c_out, exp):
    ks = jax.random.split(key, 6)
    # PyTorch conv weight layouts.
    w1_pt = 0.1 * jax.random.normal(ks[0], (exp, c_in, 1, 1), jnp.float32)
    wdw_pt = 0.1 * jax.random.normal(ks[1], (exp, 1, 3, 3), jnp.float32)
    w3_pt = 0.1 * jax.random.normal(ks[2], (c_out, exp, 1, 1), jnp.float32)

    def bn(k, c):
        k1, k2, k3, k4 = jax.random.split(k, 4)
        gamma = 1.0 + 0.1 * jax.random.normal(k1, (c,), jnp.float32)
        beta = 0.1 * jax.random.normal(k2, (c,), jnp.float32)
        mean = 0.1 * jax.random.normal(k3, (c,), jnp.float32)
        var = jnp.abs(jax.random.normal(k4, (c,), jnp.float32)) + 0.5
        return _fold_bn(gamma, beta, mean, var)

    s1, b1 = bn(ks[3], exp)
    s2, b2 = bn(ks[4], exp)
    s3, b3 = bn(ks[5], c_out)

    # NHWC-friendly layouts with the BN scale folded into the conv weights;
    # matmul weights cast to bf16 (MXU-native), depthwise weight kept f32.
    w1 = (w1_pt[:, :, 0, 0].T * s1[None, :]).astype(jnp.bfloat16)        # (cin, exp)
    wdw = jnp.transpose(wdw_pt[:, 0], (1, 2, 0)) * s2[None, None, :]     # (3,3,exp)
    w3 = (w3_pt[:, :, 0, 0].T * s3[None, :]).astype(jnp.bfloat16)        # (exp, cout)

    return (w1, b1.reshape(1, -1), wdw, b2.reshape(1, -1),
            w3, b3.reshape(1, -1))


def ref_forward(x_nchw, params, *, use_res: bool):
    """Pure-JAX/XLA reference applying the same bf16 casts as the kernel."""
    w1, b1, wdw, b2, w3, b3 = params
    f32 = lambda t: t.astype(jnp.float32)
    x = f32(jnp.transpose(x_nchw, (0, 2, 3, 1)).astype(jnp.bfloat16))
    exp = w1.shape[1]
    dn = ("NHWC", "HWIO", "NHWC")
    a = lax.conv_general_dilated(x, f32(w1).reshape(1, 1, *w1.shape), (1, 1),
                                 "VALID", dimension_numbers=dn)
    a = jnp.clip(a + b1.reshape(1, 1, 1, -1), 0.0, 6.0)
    b = lax.conv_general_dilated(a, wdw.reshape(3, 3, 1, exp), (1, 1),
                                 "SAME", dimension_numbers=dn,
                                 feature_group_count=exp)
    b = jnp.clip(b + b2.reshape(1, 1, 1, -1), 0.0, 6.0)
    b = f32(b.astype(jnp.bfloat16))
    c = lax.conv_general_dilated(b, f32(w3).reshape(1, 1, *w3.shape), (1, 1),
                                 "VALID", dimension_numbers=dn)
    c = c + b3.reshape(1, 1, 1, -1)
    if use_res:
        c = c + x
    return jnp.transpose(c, (0, 3, 1, 2))


if __name__ == "__main__":
    N, C_IN, C_OUT, EXP, HW = 2, 4, 4, 8, 16   # c_in == c_out -> residual path
    key = jax.random.PRNGKey(0)
    kx, kp = jax.random.split(key)
    x = jax.random.normal(kx, (N, C_IN, HW, HW), jnp.float32)
    params = make_params(kp, C_IN, C_OUT, EXP)
    use_res = C_IN == C_OUT

    out = inverted_residual(x, params, use_res=use_res, tile_h=8)
    out = jax.block_until_ready(out)

    ref = ref_forward(x, params, use_res=use_res)
    assert out.shape == (N, C_OUT, HW, HW)
    err = float(jnp.max(jnp.abs(out - ref)))
    assert jnp.allclose(out, ref, atol=5e-2, rtol=5e-2), err
    print("KERNEL_OK")
</pallas_src>

<mosaic_0001>
module attributes {stable_mosaic.version = 11 : i64} {
  func.func @_inverted_residual_kernel(%arg0: i32, %arg1: i32, %arg2: memref<1x1x10x16x4xbf16, #tpu.memory_space<vmem>>, %arg3: memref<4x8xbf16, #tpu.memory_space<vmem>>, %arg4: memref<1x8xf32, #tpu.memory_space<vmem>>, %arg5: memref<3x3x8xf32, #tpu.memory_space<vmem>>, %arg6: memref<1x8xf32, #tpu.memory_space<vmem>>, %arg7: memref<8x4xbf16, #tpu.memory_space<vmem>>, %arg8: memref<1x4xf32, #tpu.memory_space<vmem>>, %arg9: memref<1x1x8x16x4xbf16, #tpu.memory_space<vmem>>) attributes {dimension_semantics = [#tpu.dimension_semantics<parallel>, #tpu.dimension_semantics<parallel>], iteration_bounds = array<i64: 2, 2>, scalar_prefetch = 0 : i64, scratch_operands = 0 : i64, tpu.core_type = #tpu.core_type<tc>, window_params = [{transform_indices = @transform_0, window_bounds = array<i64: 1, 1, 10, 16, 4>}, {pipeline_mode = #tpu.pipeline_mode<synchronous>, transform_indices = @transform_1, window_bounds = array<i64: 4, 8>}, {pipeline_mode = #tpu.pipeline_mode<synchronous>, transform_indices = @transform_2, window_bounds = array<i64: 1, 8>}, {pipeline_mode = #tpu.pipeline_mode<synchronous>, transform_indices = @transform_3, window_bounds = array<i64: 3, 3, 8>}, {pipeline_mode = #tpu.pipeline_mode<synchronous>, transform_indices = @transform_4, window_bounds = array<i64: 1, 8>}, {pipeline_mode = #tpu.pipeline_mode<synchronous>, transform_indices = @transform_5, window_bounds = array<i64: 8, 4>}, {pipeline_mode = #tpu.pipeline_mode<synchronous>, transform_indices = @transform_6, window_bounds = array<i64: 1, 4>}, {transform_indices = @transform_7, window_bounds = array<i64: 1, 1, 8, 16, 4>}]} {
    %c0 = arith.constant 0 : index
    %c0_0 = arith.constant 0 : index
    %c0_1 = arith.constant 0 : index
    %c0_2 = arith.constant 0 : index
    %c0_3 = arith.constant 0 : index
    %0 = vector.load %arg2[%c0, %c0_0, %c0_1, %c0_2, %c0_3] : memref<1x1x10x16x4xbf16, #tpu.memory_space<vmem>>, vector<1x1x10x16x4xbf16>
    %1 = vector.shape_cast %0 : vector<1x1x10x16x4xbf16> to vector<10x16x4xbf16>
    %2 = vector.shape_cast %1 : vector<10x16x4xbf16> to vector<160x4xbf16>
    %c0_4 = arith.constant 0 : index
    %c0_5 = arith.constant 0 : index
    %3 = vector.load %arg3[%c0_4, %c0_5] : memref<4x8xbf16, #tpu.memory_space<vmem>>, vector<4x8xbf16>
    %cst = arith.constant dense<0.000000e+00> : vector<160x8xf32>
    %4 = tpu.matmul %2, %3, %cst {dimension_numbers = #tpu.dot_dimension_numbers<[1], [0], [0], [1], [0, 0, 1, 1], [], []>} : vector<160x4xbf16>, vector<4x8xbf16>, vector<160x8xf32> -> vector<160x8xf32>
    %c0_6 = arith.constant 0 : index
    %c0_7 = arith.constant 0 : index
    %5 = vector.load %arg4[%c0_6, %c0_7] : memref<1x8xf32, #tpu.memory_space<vmem>>, vector<1x8xf32>
    %6 = vector.broadcast %5 : vector<1x8xf32> to vector<160x8xf32>
    %7 = arith.addf %4, %6 : vector<160x8xf32>
    %cst_8 = arith.constant 0.000000e+00 : f32
    %cst_9 = arith.constant 6.000000e+00 : f32
    %8 = vector.broadcast %cst_8 : f32 to vector<160x8xf32>
    %9 = arith.maximumf %8, %7 : vector<160x8xf32>
    %10 = vector.broadcast %cst_9 : f32 to vector<160x8xf32>
    %11 = arith.minimumf %10, %9 : vector<160x8xf32>
    %12 = vector.shape_cast %11 : vector<160x8xf32> to vector<10x16x8xf32>
    %c8_i32 = arith.constant 8 : i32
    %13 = arith.muli %arg1, %c8_i32 : i32
    %14 = tpu.iota {dimensions = array<i32: 0>} : vector<10x1x1xi32>
    %15 = vector.broadcast %13 : i32 to vector<10x1x1xi32>
    %16 = arith.addi %15, %14 : vector<10x1x1xi32>
    %c1_i32 = arith.constant 1 : i32
    %17 = vector.broadcast %c1_i32 : i32 to vector<10x1x1xi32>
    %18 = arith.cmpi sge, %16, %17 : vector<10x1x1xi32>
    %c16_i32 = arith.constant 16 : i32
    %19 = vector.broadcast %c16_i32 : i32 to vector<10x1x1xi32>
    %20 = arith.cmpi sle, %16, %19 : vector<10x1x1xi32>
    %21 = arith.andi %18, %20 : vector<10x1x1xi1>
    %cst_10 = arith.constant 0.000000e+00 : f32
    %22 = vector.shape_cast %21 : vector<10x1x1xi1> to vector<10x1x1xi1>
    %23 = vector.broadcast %22 : vector<10x1x1xi1> to vector<10x16x8xi1>
    %24 = vector.broadcast %cst_10 : f32 to vector<10x16x8xf32>
    %25 = arith.select %23, %12, %24 : vector<10x16x8xi1>, vector<10x16x8xf32>
    %26 = tpu.iota {dimensions = array<i32: 1>} : vector<1x16x1xi32>
    %c1_i32_11 = arith.constant 1 : i32
    %27 = vector.broadcast %c1_i32_11 : i32 to vector<1x16x1xi32>
    %28 = arith.cmpi sge, %26, %27 : vector<1x16x1xi32>
    %c1_i32_12 = arith.constant 1 : i32
    %29 = tpu.dynamic_rotate %25 by %c1_i32_12 dim 1 : vector<10x16x8xf32>, i32 -> vector<10x16x8xf32>
    %cst_13 = arith.constant 0.000000e+00 : f32
    %30 = vector.shape_cast %28 : vector<1x16x1xi1> to vector<1x16x1xi1>
    %31 = vector.broadcast %30 : vector<1x16x1xi1> to vector<10x16x8xi1>
    %32 = vector.broadcast %cst_13 : f32 to vector<10x16x8xf32>
    %33 = arith.select %31, %29, %32 : vector<10x16x8xi1>, vector<10x16x8xf32>
    %c14_i32 = arith.constant 14 : i32
    %34 = vector.broadcast %c14_i32 : i32 to vector<1x16x1xi32>
    %35 = arith.cmpi sle, %26, %34 : vector<1x16x1xi32>
    %c15_i32 = arith.constant 15 : i32
    %36 = tpu.dynamic_rotate %25 by %c15_i32 dim 1 : vector<10x16x8xf32>, i32 -> vector<10x16x8xf32>
    %cst_14 = arith.constant 0.000000e+00 : f32
    %37 = vector.shape_cast %35 : vector<1x16x1xi1> to vector<1x16x1xi1>
    %38 = vector.broadcast %37 : vector<1x16x1xi1> to vector<10x16x8xi1>
    %39 = vector.broadcast %cst_14 : f32 to vector<10x16x8xf32>
    %40 = arith.select %38, %36, %39 : vector<10x16x8xi1>, vector<10x16x8xf32>
    %c0_15 = arith.constant 0 : index
    %c0_16 = arith.constant 0 : index
    %c0_17 = arith.constant 0 : index
    %41 = vector.load %arg5[%c0_15, %c0_16, %c0_17] : memref<3x3x8xf32, #tpu.memory_space<vmem>>, vector<3x3x8xf32>
    %42 = vector.extract_strided_slice %33 {offsets = [0, 0, 0], sizes = [8, 16, 8], strides = [1, 1, 1]} : vector<10x16x8xf32> to vector<8x16x8xf32>
    %43 = vector.extract_strided_slice %41 {offsets = [0, 0, 0], sizes = [1, 1, 8], strides = [1, 1, 1]} : vector<3x3x8xf32> to vector<1x1x8xf32>
    %44 = vector.shape_cast %43 : vector<1x1x8xf32> to vector<8xf32>
    %45 = vector.shape_cast %44 : vector<8xf32> to vector<1x1x8xf32>
    %46 = vector.broadcast %45 : vector<1x1x8xf32> to vector<8x16x8xf32>
    %47 = arith.mulf %42, %46 : vector<8x16x8xf32>
    %48 = vector.extract_strided_slice %25 {offsets = [0, 0, 0], sizes = [8, 16, 8], strides = [1, 1, 1]} : vector<10x16x8xf32> to vector<8x16x8xf32>
    %49 = vector.extract_strided_slice %41 {offsets = [0, 1, 0], sizes = [1, 1, 8], strides = [1, 1, 1]} : vector<3x3x8xf32> to vector<1x1x8xf32>
    %50 = vector.shape_cast %49 : vector<1x1x8xf32> to vector<8xf32>
    %51 = vector.shape_cast %50 : vector<8xf32> to vector<1x1x8xf32>
    %52 = vector.broadcast %51 : vector<1x1x8xf32> to vector<8x16x8xf32>
    %53 = arith.mulf %48, %52 : vector<8x16x8xf32>
    %54 = arith.addf %47, %53 : vector<8x16x8xf32>
    %55 = vector.extract_strided_slice %40 {offsets = [0, 0, 0], sizes = [8, 16, 8], strides = [1, 1, 1]} : vector<10x16x8xf32> to vector<8x16x8xf32>
    %56 = vector.extract_strided_slice %41 {offsets = [0, 2, 0], sizes = [1, 1, 8], strides = [1, 1, 1]} : vector<3x3x8xf32> to vector<1x1x8xf32>
    %57 = vector.shape_cast %56 : vector<1x1x8xf32> to vector<8xf32>
    %58 = vector.shape_cast %57 : vector<8xf32> to vector<1x1x8xf32>
    %59 = vector.broadcast %58 : vector<1x1x8xf32> to vector<8x16x8xf32>
    %60 = arith.mulf %55, %59 : vector<8x16x8xf32>
    %61 = arith.addf %54, %60 : vector<8x16x8xf32>
    %62 = vector.extract_strided_slice %33 {offsets = [1, 0, 0], sizes = [8, 16, 8], strides = [1, 1, 1]} : vector<10x16x8xf32> to vector<8x16x8xf32>
    %63 = vector.extract_strided_slice %41 {offsets = [1, 0, 0], sizes = [1, 1, 8], strides = [1, 1, 1]} : vector<3x3x8xf32> to vector<1x1x8xf32>
    %64 = vector.shape_cast %63 : vector<1x1x8xf32> to vector<8xf32>
    %65 = vector.shape_cast %64 : vector<8xf32> to vector<1x1x8xf32>
    %66 = vector.broadcast %65 : vector<1x1x8xf32> to vector<8x16x8xf32>
    %67 = arith.mulf %62, %66 : vector<8x16x8xf32>
    %68 = arith.addf %61, %67 : vector<8x16x8xf32>
    %69 = vector.extract_strided_slice %25 {offsets = [1, 0, 0], sizes = [8, 16, 8], strides = [1, 1, 1]} : vector<10x16x8xf32> to vector<8x16x8xf32>
    %70 = vector.extract_strided_slice %41 {offsets = [1, 1, 0], sizes = [1, 1, 8], strides = [1, 1, 1]} : vector<3x3x8xf32> to vector<1x1x8xf32>
    %71 = vector.shape_cast %70 : vector<1x1x8xf32> to vector<8xf32>
    %72 = vector.shape_cast %71 : vector<8xf32> to vector<1x1x8xf32>
    %73 = vector.broadcast %72 : vector<1x1x8xf32> to vector<8x16x8xf32>
    %74 = arith.mulf %69, %73 : vector<8x16x8xf32>
    %75 = arith.addf %68, %74 : vector<8x16x8xf32>
    %76 = vector.extract_strided_slice %40 {offsets = [1, 0, 0], sizes = [8, 16, 8], strides = [1, 1, 1]} : vector<10x16x8xf32> to vector<8x16x8xf32>
    %77 = vector.extract_strided_slice %41 {offsets = [1, 2, 0], sizes = [1, 1, 8], strides = [1, 1, 1]} : vector<3x3x8xf32> to vector<1x1x8xf32>
    %78 = vector.shape_cast %77 : vector<1x1x8xf32> to vector<8xf32>
    %79 = vector.shape_cast %78 : vector<8xf32> to vector<1x1x8xf32>
    %80 = vector.broadcast %79 : vector<1x1x8xf32> to vector<8x16x8xf32>
    %81 = arith.mulf %76, %80 : vector<8x16x8xf32>
    %82 = arith.addf %75, %81 : vector<8x16x8xf32>
    %83 = vector.extract_strided_slice %33 {offsets = [2, 0, 0], sizes = [8, 16, 8], strides = [1, 1, 1]} : vector<10x16x8xf32> to vector<8x16x8xf32>
    %84 = vector.extract_strided_slice %41 {offsets = [2, 0, 0], sizes = [1, 1, 8], strides = [1, 1, 1]} : vector<3x3x8xf32> to vector<1x1x8xf32>
    %85 = vector.shape_cast %84 : vector<1x1x8xf32> to vector<8xf32>
    %86 = vector.shape_cast %85 : vector<8xf32> to vector<1x1x8xf32>
    %87 = vector.broadcast %86 : vector<1x1x8xf32> to vector<8x16x8xf32>
    %88 = arith.mulf %83, %87 : vector<8x16x8xf32>
    %89 = arith.addf %82, %88 : vector<8x16x8xf32>
    %90 = vector.extract_strided_slice %25 {offsets = [2, 0, 0], sizes = [8, 16, 8], strides = [1, 1, 1]} : vector<10x16x8xf32> to vector<8x16x8xf32>
    %91 = vector.extract_strided_slice %41 {offsets = [2, 1, 0], sizes = [1, 1, 8], strides = [1, 1, 1]} : vector<3x3x8xf32> to vector<1x1x8xf32>
    %92 = vector.shape_cast %91 : vector<1x1x8xf32> to vector<8xf32>
    %93 = vector.shape_cast %92 : vector<8xf32> to vector<1x1x8xf32>
    %94 = vector.broadcast %93 : vector<1x1x8xf32> to vector<8x16x8xf32>
    %95 = arith.mulf %90, %94 : vector<8x16x8xf32>
    %96 = arith.addf %89, %95 : vector<8x16x8xf32>
    %97 = vector.extract_strided_slice %40 {offsets = [2, 0, 0], sizes = [8, 16, 8], strides = [1, 1, 1]} : vector<10x16x8xf32> to vector<8x16x8xf32>
    %98 = vector.extract_strided_slice %41 {offsets = [2, 2, 0], sizes = [1, 1, 8], strides = [1, 1, 1]} : vector<3x3x8xf32> to vector<1x1x8xf32>
    %99 = vector.shape_cast %98 : vector<1x1x8xf32> to vector<8xf32>
    %100 = vector.shape_cast %99 : vector<8xf32> to vector<1x1x8xf32>
    %101 = vector.broadcast %100 : vector<1x1x8xf32> to vector<8x16x8xf32>
    %102 = arith.mulf %97, %101 : vector<8x16x8xf32>
    %103 = arith.addf %96, %102 : vector<8x16x8xf32>
    %c0_18 = arith.constant 0 : index
    %c0_19 = arith.constant 0 : index
    %104 = vector.load %arg6[%c0_18, %c0_19] : memref<1x8xf32, #tpu.memory_space<vmem>>, vector<1x8xf32>
    %105 = vector.shape_cast %104 : vector<1x8xf32> to vector<1x1x8xf32>
    %106 = vector.broadcast %105 : vector<1x1x8xf32> to vector<8x16x8xf32>
    %107 = arith.addf %103, %106 : vector<8x16x8xf32>
    %cst_20 = arith.constant 0.000000e+00 : f32
    %cst_21 = arith.constant 6.000000e+00 : f32
    %108 = vector.broadcast %cst_20 : f32 to vector<8x16x8xf32>
    %109 = arith.maximumf %108, %107 : vector<8x16x8xf32>
    %110 = vector.broadcast %cst_21 : f32 to vector<8x16x8xf32>
    %111 = arith.minimumf %110, %109 : vector<8x16x8xf32>
    %112 = vector.shape_cast %111 : vector<8x16x8xf32> to vector<128x8xf32>
    %113 = arith.truncf %112 : vector<128x8xf32> to vector<128x8xbf16>
    %c0_22 = arith.constant 0 : index
    %c0_23 = arith.constant 0 : index
    %114 = vector.load %arg7[%c0_22, %c0_23] : memref<8x4xbf16, #tpu.memory_space<vmem>>, vector<8x4xbf16>
    %cst_24 = arith.constant dense<0.000000e+00> : vector<128x4xf32>
    %115 = tpu.matmul %113, %114, %cst_24 {dimension_numbers = #tpu.dot_dimension_numbers<[1], [0], [0], [1], [0, 0, 1, 1], [], []>} : vector<128x8xbf16>, vector<8x4xbf16>, vector<128x4xf32> -> vector<128x4xf32>
    %c0_25 = arith.constant 0 : index
    %c0_26 = arith.constant 0 : index
    %116 = vector.load %arg8[%c0_25, %c0_26] : memref<1x4xf32, #tpu.memory_space<vmem>>, vector<1x4xf32>
    %117 = vector.broadcast %116 : vector<1x4xf32> to vector<128x4xf32>
    %118 = arith.addf %115, %117 : vector<128x4xf32>
    %119 = vector.shape_cast %118 : vector<128x4xf32> to vector<8x16x4xf32>
    %120 = vector.extract_strided_slice %1 {offsets = [1, 0, 0], sizes = [8, 16, 4], strides = [1, 1, 1]} : vector<10x16x4xbf16> to vector<8x16x4xbf16>
    %121 = arith.extf %120 : vector<8x16x4xbf16> to vector<8x16x4xf32>
    %122 = arith.addf %119, %121 : vector<8x16x4xf32>
    %123 = arith.truncf %122 : vector<8x16x4xf32> to vector<8x16x4xbf16>
    %c0_27 = arith.constant 0 : index
    %c0_28 = arith.constant 0 : index
    %c0_29 = arith.constant 0 : index
    %c0_30 = arith.constant 0 : index
    %c0_31 = arith.constant 0 : index
    %124 = vector.load %arg9[%c0_27, %c0_28, %c0_29, %c0_30, %c0_31] : memref<1x1x8x16x4xbf16, #tpu.memory_space<vmem>>, vector<1x1x8x16x4xbf16>
    %125 = vector.shape_cast %124 : vector<1x1x8x16x4xbf16> to vector<8x16x4xbf16>
    %126 = vector.shape_cast %123 : vector<8x16x4xbf16> to vector<1x1x8x16x4xbf16>
    tpu.vector_store %arg9[%c0_27, %c0_28, %c0_29, %c0_30, %c0_31], %126 {strides = array<i32>} : memref<1x1x8x16x4xbf16, #tpu.memory_space<vmem>>, vector<1x1x8x16x4xbf16>,
    return
  }
  func.func @transform_0(%arg0: i32, %arg1: i32) -> (i32, i32, i32, i32, i32) {
    %c0_i32 = arith.constant 0 : i32
    %c0_i32_0 = arith.constant 0 : i32
    %c0_i32_1 = arith.constant 0 : i32
    %c0_i32_2 = arith.constant 0 : i32
    return %arg0, %arg1, %c0_i32, %c0_i32_0, %c0_i32_1 : i32, i32, i32, i32, i32
  }
  func.func @transform_1(%arg0: i32, %arg1: i32) -> (i32, i32) {
    %c0_i32 = arith.constant 0 : i32
    %c0_i32_0 = arith.constant 0 : i32
    %c0_i32_1 = arith.constant 0 : i32
    return %c0_i32, %c0_i32_0 : i32, i32
  }
  func.func @transform_2(%arg0: i32, %arg1: i32) -> (i32, i32) {
    %c0_i32 = arith.constant 0 : i32
    %c0_i32_0 = arith.constant 0 : i32
    %c0_i32_1 = arith.constant 0 : i32
    return %c0_i32, %c0_i32_0 : i32, i32
  }
  func.func @transform_3(%arg0: i32, %arg1: i32) -> (i32, i32, i32) {
    %c0_i32 = arith.constant 0 : i32
    %c0_i32_0 = arith.constant 0 : i32
    %c0_i32_1 = arith.constant 0 : i32
    %c0_i32_2 = arith.constant 0 : i32
    return %c0_i32, %c0_i32_0, %c0_i32_1 : i32, i32, i32
  }
  func.func @transform_4(%arg0: i32, %arg1: i32) -> (i32, i32) {
    %c0_i32 = arith.constant 0 : i32
    %c0_i32_0 = arith.constant 0 : i32
    %c0_i32_1 = arith.constant 0 : i32
    return %c0_i32, %c0_i32_0 : i32, i32
  }
  func.func @transform_5(%arg0: i32, %arg1: i32) -> (i32, i32) {
    %c0_i32 = arith.constant 0 : i32
    %c0_i32_0 = arith.constant 0 : i32
    %c0_i32_1 = arith.constant 0 : i32
    return %c0_i32, %c0_i32_0 : i32, i32
  }
  func.func @transform_6(%arg0: i32, %arg1: i32) -> (i32, i32) {
    %c0_i32 = arith.constant 0 : i32
    %c0_i32_0 = arith.constant 0 : i32
    %c0_i32_1 = arith.constant 0 : i32
    return %c0_i32, %c0_i32_0 : i32, i32
  }
  func.func @transform_7(%arg0: i32, %arg1: i32) -> (i32, i32, i32, i32, i32) {
    %c0_i32 = arith.constant 0 : i32
    %c0_i32_0 = arith.constant 0 : i32
    %c0_i32_1 = arith.constant 0 : i32
    %c0_i32_2 = arith.constant 0 : i32
    return %arg0, %arg1, %c0_i32, %c0_i32_0, %c0_i32_1 : i32, i32, i32, i32, i32
  }
}

</mosaic_0001>

<llo_original>
// kernel: tpu_custom_call.1
$region0: #{tpu_custom_call.1}
  #allocation0 [shape = 'u32[]', space=smem, size = 0x4, offset = 0x4, fixed_abs, tag = 'smem constant byte address 0x4 - core index']
  #allocation1 [shape = 'u32[144,128]{1,0:T(1,128)}', space=vmem, size = 0x12000, scoped, tag = 'internal scratch']
  %s0 = inlined_call_operand.vmem [shape: bf16[2,2,10,16,4], index: 0, kind: input, shape index: {}]
  %s1 = inlined_call_operand.vmem [shape: bf16[4,8], index: 1, kind: input, shape index: {}]
  %s2 = inlined_call_operand.vmem [shape: f32[1,8], index: 2, kind: input, shape index: {}]
  %s3 = inlined_call_operand.vmem [shape: f32[3,3,8], index: 3, kind: input, shape index: {}]
  %s4 = inlined_call_operand.vmem [shape: f32[1,8], index: 4, kind: input, shape index: {}]
  %s5 = inlined_call_operand.vmem [shape: bf16[8,4], index: 5, kind: input, shape index: {}]
  %s6 = inlined_call_operand.vmem [shape: f32[1,4], index: 6, kind: input, shape index: {}]
  %s7 = inlined_call_operand.vmem [shape: bf16[2,2,8,16,4], index: 7, kind: output, shape index: {}]
  %s8 = sld [smem:[#allocation0]]
  $region61: #{tpu_custom_call.1} parent=0
    _
  %s10 = ssub.s32 1, %s8
  %s11 = scalar_select 0, %s10, %s8
  loop: start=0, step=1, limit=6
  $region2: #{tpu_custom_call.1} parent=0 // loop_pre_header
    _
  $region3: #{tpu_custom_call.1} parent=0 // loop_header
    %s13 = sphi 0, %s17
    %p14 = scmp.ge.s32.totalorder %s13, 6
    %s20 = sphi 0, %s32
    %s21 = sphi 0, %s28
    %s22 = sphi 0, %s20
    %s23 = sphi 0, %s21
    %s24 = sphi 0, %s22
    %s25 = sphi 0, %s23
    %s37 = sphi 0, %s39
    %s40 = sphi 0, %s37
    %s41 = sphi 0, %s40
    %s57 = sphi 0, %s41
    %s61 = sphi 0, %s61
    %s63 = sphi 0, %s61
    %s64 = sphi 0, %s63
    %s78 = sphi 0, %s64
    %s82 = sphi 0, %s82
    %s84 = sphi 0, %s82
    %s85 = sphi 0, %s84
    %s99 = sphi 0, %s85
    %s103 = sphi 0, %s103
    %s105 = sphi 0, %s103
    %s106 = sphi 0, %s105
    %s120 = sphi 0, %s106
    %s124 = sphi 0, %s124
    %s126 = sphi 0, %s124
    %s127 = sphi 0, %s126
    %s141 = sphi 0, %s127
    %s145 = sphi 0, %s145
    %s147 = sphi 0, %s145
    %s148 = sphi 0, %s147
    %s162 = sphi 0, %s148
    %s166 = sphi 0, %s166
    %s168 = sphi 0, %s166
    %s169 = sphi 0, %s168
    %s183 = sphi 0, %s169
    %s191 = sphi 0, %s193
    %s194 = sphi 0, %s191
    %s195 = sphi 0, %s194
    %s211 = sphi 0, %s195
  $region4: #{tpu_custom_call.1} parent=0 // loop_header_branch
    %16 = sbr.rel (%p14) target = $region8
  $region5: #{tpu_custom_call.1} parent=0 // loop_body
    %s18 = ssub.s32 %s13, 1
    %s19 = ssub.s32 %s13, 2
    %s26 = sadd.s32 1, %s21
    %p27 = scmp.ge.s32.totalorder %s26, 2
    %s28 = scalar_select %p27, 0, %s26
    %s29 = sadd.s32 1, %s20
    %s30 = scalar_select %p27, %s29, %s20
    %p31 = scmp.ge.s32.totalorder %s30, 2
    %s32 = scalar_select %p31, 0, %s30
    %s33 = ssub.s32 %s20, %s32
    %s34 = ssub.s32 %s21, %s28
    %s35 = sor.u32 %s33, %s34
    %p36 = scmp.eq.s32.totalorder %s35, 0
    %s38 = sadd.s32 %s37, 1
    %s39 = scalar_select %p36, %s37, %s38
    %p42 = pneg %p36
    %p43 = scmp.eq.s32.totalorder %s13, 3
    %p44 = por %p42, %p43
    %p45 = scmp.ne.s32.totalorder %s37, %s40
    %p46 = scmp.eq.s32.totalorder %s13, 0
    %p47 = por %p45, %p46
    %p48 = scmp.ne.s32.totalorder %s37, %s40
    %p49 = scmp.eq.s32.totalorder %s18, 3
    %p50 = por %p48, %p49
    %p51 = scmp.ne.s32.totalorder %s40, %s41
    %p52 = scmp.eq.s32.totalorder %s18, 0
    %p53 = por %p51, %p52
    %p54 = scmp.ne.s32.totalorder %s40, %s41
    %p55 = scmp.eq.s32.totalorder %s19, 3
    %p56 = por %p54, %p55
    %p58 = scmp.ne.s32.totalorder %s41, %s57
    %p59 = scmp.eq.s32.totalorder %s19, 0
    %p60 = por %p58, %p59
    %s62 = sadd.s32 %s61, 1
    %p65 = scmp.eq.s32.totalorder %s13, 3
    %p66 = scmp.ne.s32.totalorder %s61, %s63
    %p67 = scmp.eq.s32.totalorder %s13, 0
    %p68 = por %p66, %p67
    %p69 = scmp.ne.s32.totalorder %s61, %s63
    %p70 = scmp.eq.s32.totalorder %s18, 3
    %p71 = por %p69, %p70
    %p72 = scmp.ne.s32.totalorder %s63, %s64
    %p73 = scmp.eq.s32.totalorder %s18, 0
    %p74 = por %p72, %p73
    %p75 = scmp.ne.s32.totalorder %s63, %s64
    %p76 = scmp.eq.s32.totalorder %s19, 3
    %p77 = por %p75, %p76
    %p79 = scmp.ne.s32.totalorder %s64, %s78
    %p80 = scmp.eq.s32.totalorder %s19, 0
    %p81 = por %p79, %p80
    %s83 = sadd.s32 %s82, 1
    %p86 = scmp.eq.s32.totalorder %s13, 3
    %p87 = scmp.ne.s32.totalorder %s82, %s84
    %p88 = scmp.eq.s32.totalorder %s13, 0
    %p89 = por %p87, %p88
    %p90 = scmp.ne.s32.totalorder %s82, %s84
    %p91 = scmp.eq.s32.totalorder %s18, 3
    %p92 = por %p90, %p91
    %p93 = scmp.ne.s32.totalorder %s84, %s85
    %p94 = scmp.eq.s32.totalorder %s18, 0
    %p95 = por %p93, %p94
    %p96 = scmp.ne.s32.totalorder %s84, %s85
    %p97 = scmp.eq.s32.totalorder %s19, 3
    %p98 = por %p96, %p97
    %p100 = scmp.ne.s32.totalorder %s85, %s99
    %p101 = scmp.eq.s32.totalorder %s19, 0
    %p102 = por %p100, %p101
    %s104 = sadd.s32 %s103, 1
    %p107 = scmp.eq.s32.totalorder %s13, 3
    %p108 = scmp.ne.s32.totalorder %s103, %s105
    %p109 = scmp.eq.s32.totalorder %s13, 0
    %p110 = por %p108, %p109
    %p111 = scmp.ne.s32.totalorder %s103, %s105
    %p112 = scmp.eq.s32.totalorder %s18, 3
    %p113 = por %p111, %p112
    %p114 = scmp.ne.s32.totalorder %s105, %s106
    %p115 = scmp.eq.s32.totalorder %s18, 0
    %p116 = por %p114, %p115
    %p117 = scmp.ne.s32.totalorder %s105, %s106
    %p118 = scmp.eq.s32.totalorder %s19, 3
    %p119 = por %p117, %p118
    %p121 = scmp.ne.s32.totalorder %s106, %s120
    %p122 = scmp.eq.s32.totalorder %s19, 0
    %p123 = por %p121, %p122
    %s125 = sadd.s32 %s124, 1
    %p128 = scmp.eq.s32.totalorder %s13, 3
    %p129 = scmp.ne.s32.totalorder %s124, %s126
    %p130 = scmp.eq.s32.totalorder %s13, 0
    %p131 = por %p129, %p130
    %p132 = scmp.ne.s32.totalorder %s124, %s126
    %p133 = scmp.eq.s32.totalorder %s18, 3
    %p134 = por %p132, %p133
    %p135 = scmp.ne.s32.totalorder %s126, %s127
    %p136 = scmp.eq.s32.totalorder %s18, 0
    %p137 = por %p135, %p136
    %p138 = scmp.ne.s32.totalorder %s126, %s127
    %p139 = scmp.eq.s32.totalorder %s19, 3
    %p140 = por %p138, %p139
    %p142 = scmp.ne.s32.totalorder %s127, %s141
    %p143 = scmp.eq.s32.totalorder %s19, 0
    %p144 = por %p142, %p143
    %s146 = sadd.s32 %s145, 1
    %p149 = scmp.eq.s32.totalorder %s13, 3
    %p150 = scmp.ne.s32.totalorder %s145, %s147
    %p151 = scmp.eq.s32.totalorder %s13, 0
    %p152 = por %p150, %p151
    %p153 = scmp.ne.s32.totalorder %s145, %s147
    %p154 = scmp.eq.s32.totalorder %s18, 3
    %p155 = por %p153, %p154
    %p156 = scmp.ne.s32.totalorder %s147, %s148
    %p157 = scmp.eq.s32.totalorder %s18, 0
    %p158 = por %p156, %p157
    %p159 = scmp.ne.s32.totalorder %s147, %s148
    %p160 = scmp.eq.s32.totalorder %s19, 3
    %p161 = por %p159, %p160
    %p163 = scmp.ne.s32.totalorder %s148, %s162
    %p164 = scmp.eq.s32.totalorder %s19, 0
    %p165 = por %p163, %p164
    %s167 = sadd.s32 %s166, 1
    %p170 = scmp.eq.s32.totalorder %s13, 3
    %p171 = scmp.ne.s32.totalorder %s166, %s168
    %p172 = scmp.eq.s32.totalorder %s13, 0
    %p173 = por %p171, %p172
    %p174 = scmp.ne.s32.totalorder %s166, %s168
    %p175 = scmp.eq.s32.totalorder %s18, 3
    %p176 = por %p174, %p175
    %p177 = scmp.ne.s32.totalorder %s168, %s169
    %p178 = scmp.eq.s32.totalorder %s18, 0
    %p179 = por %p177, %p178
    %p180 = scmp.ne.s32.totalorder %s168, %s169
    %p181 = scmp.eq.s32.totalorder %s19, 3
    %p182 = por %p180, %p181
    %p184 = scmp.ne.s32.totalorder %s169, %s183
    %p185 = scmp.eq.s32.totalorder %s19, 0
    %p186 = por %p184, %p185
    %s187 = ssub.s32 %s20, %s32
    %s188 = ssub.s32 %s21, %s28
    %s189 = sor.u32 %s187, %s188
    %p190 = scmp.eq.s32.totalorder %s189, 0
    %s192 = sadd.s32 %s191, 1
    %s193 = scalar_select %p190, %s191, %s192
    %p196 = pneg %p190
    %p197 = scmp.eq.s32.totalorder %s13, 3
    %p198 = por %p196, %p197
    %p199 = scmp.ne.s32.totalorder %s191, %s194
    %p200 = scmp.eq.s32.totalorder %s13, 0
    %p201 = por %p199, %p200
    %p202 = scmp.ne.s32.totalorder %s191, %s194
    %p203 = scmp.eq.s32.totalorder %s18, 3
    %p204 = por %p202, %p203
    %p205 = scmp.ne.s32.totalorder %s194, %s195
    %p206 = scmp.eq.s32.totalorder %s18, 0
    %p207 = por %p205, %p206
    %p208 = scmp.ne.s32.totalorder %s194, %s195
    %p209 = scmp.eq.s32.totalorder %s19, 3
    %p210 = por %p208, %p209
    %p212 = scmp.ne.s32.totalorder %s195, %s211
    %p213 = scmp.eq.s32.totalorder %s19, 0
    %p214 = por %p212, %p213
    %p215 = scmp.le.s32.totalorder 1, %s13
    %p216 = scmp.lt.s32.totalorder %s13, 5
    %p217 = pnand %p215, %p216
    %p218 = pneg %p217
    // Predicated region
    $region9: #{tpu_custom_call.1} parent=5 // pred_check
      _
    $region10: #{tpu_custom_call.1} parent=5 // pred_check_branch
      %220 = sbr.rel (%p217) target = $region12
    $region11: #{tpu_custom_call.1} parent=5 // pred_region
      %s221 = ssub.s32 %s13, 1
      // Predicated region
      $region13: #{tpu_custom_call.1} parent=11 // pred_check
        %p222 = pneg %p74
      $region14: #{tpu_custom_call.1} parent=11 // pred_check_branch
        %224 = sbr.rel (%p222) target = $region16
      $region15: #{tpu_custom_call.1} parent=11 // pred_region
        _
      $region16: #{tpu_custom_call.1} parent=11 // pred_fallthru
        _
      // Predicated region
      $region17: #{tpu_custom_call.1} parent=11 // pred_check
        %p225 = pneg %p95
      $region18: #{tpu_custom_call.1} parent=11 // pred_check_branch
        %227 = sbr.rel (%p225) target = $region20
      $region19: #{tpu_custom_call.1} parent=11 // pred_region
        _
      $region20: #{tpu_custom_call.1} parent=11 // pred_fallthru
        _
      // Predicated region
      $region21: #{tpu_custom_call.1} parent=11 // pred_check
        %p228 = pneg %p116
      $region22: #{tpu_custom_call.1} parent=11 // pred_check_branch
        %230 = sbr.rel (%p228) target = $region24
      $region23: #{tpu_custom_call.1} parent=11 // pred_region
        _
      $region24: #{tpu_custom_call.1} parent=11 // pred_fallthru
        _
      // Predicated region
      $region25: #{tpu_custom_call.1} parent=11 // pred_check
        %p231 = pneg %p137
      $region26: #{tpu_custom_call.1} parent=11 // pred_check_branch
        %233 = sbr.rel (%p231) target = $region28
      $region27: #{tpu_custom_call.1} parent=11 // pred_region
        _
      $region28: #{tpu_custom_call.1} parent=11 // pred_fallthru
        _
      // Predicated region
      $region29: #{tpu_custom_call.1} parent=11 // pred_check
        %p234 = pneg %p158
      $region30: #{tpu_custom_call.1} parent=11 // pred_check_branch
        %236 = sbr.rel (%p234) target = $region32
      $region31: #{tpu_custom_call.1} parent=11 // pred_region
        _
      $region32: #{tpu_custom_call.1} parent=11 // pred_fallthru
        _
      // Predicated region
      $region33: #{tpu_custom_call.1} parent=11 // pred_check
        %p237 = pneg %p179
      $region34: #{tpu_custom_call.1} parent=11 // pred_check_branch
        %239 = sbr.rel (%p237) target = $region36
      $region35: #{tpu_custom_call.1} parent=11 // pred_region
        _
      $region36: #{tpu_custom_call.1} parent=11 // pred_fallthru
        _
    $region12: #{tpu_custom_call.1} parent=5 // pred_fallthru
      _
    %p240 = scmp.lt.s32.totalorder %s13, 4
    // Predicated region
    $region37: #{tpu_custom_call.1} parent=5 // pred_check
      %p241 = pneg %p240
    $region38: #{tpu_custom_call.1} parent=5 // pred_check_branch
      %243 = sbr.rel (%p241) target = $region40
    $region39: #{tpu_custom_call.1} parent=5 // pred_region
      // Predicated region
      $region41: #{tpu_custom_call.1} parent=39 // pred_check
        %p244 = pneg %p47
      $region42: #{tpu_custom_call.1} parent=39 // pred_check_branch
        %246 = sbr.rel (%p244) target = $region44
      $region43: #{tpu_custom_call.1} parent=39 // pred_region
        %p247 = scmp.lt.s32.totalorder %s20, 1
        %s248 = scalar_select %p247, %s20, 1
        %p249 = scmp.lt.s32.totalorder %s21, 1
        %s250 = scalar_select %p249, %s21, 1
        %s251 = smul.addr %s250, 20
        %s252 = smul.addr %s248, 40
        %s253 = sadd.s32 %s251, %s252
        %s254 = smul.addr %s253, 4
        %s255 = scalar_lea.vmem %s0, %s254
      $region44: #{tpu_custom_call.1} parent=39 // pred_fallthru
        _
    $region40: #{tpu_custom_call.1} parent=5 // pred_fallthru
      _
    %p256 = scmp.le.s32.totalorder 1, %s13
    %p257 = scmp.lt.s32.totalorder %s13, 5
    %p258 = pnand %p256, %p257
    %p259 = pneg %p258
    // Predicated region
    $region45: #{tpu_custom_call.1} parent=5 // pred_check
      _
    $region46: #{tpu_custom_call.1} parent=5 // pred_check_branch
      %261 = sbr.rel (%p258) target = $region48
    $region47: #{tpu_custom_call.1} parent=5 // pred_region
      %s262 = ssub.s32 %s13, 1
      %p263 = scmp.lt.s32.totalorder %s22, 1
      %s264 = scalar_select %p263, %s22, 1
      %p265 = scmp.lt.s32.totalorder %s23, 1
      %s266 = scalar_select %p265, %s23, 1
      %s267 = smul.addr %s266, 20
      %s268 = smul.addr %s264, 40
      %s269 = sadd.s32 %s267, %s268
      %s270 = smul.addr %s269, 4
      %s271 = scalar_lea.vmem %s0, %s270
      %p272 = pneg %p53
      %p273 = pneg %p50
      %p274 = pneg %p74
      %p275 = pneg %p71
      %p276 = pneg %p95
      %p277 = pneg %p92
      %p278 = pneg %p116
      %p279 = pneg %p113
      %p280 = pneg %p137
      %p281 = pneg %p134
      %p282 = pneg %p158
      %p283 = pneg %p155
      %p284 = pneg %p179
      %p285 = pneg %p176
      %p286 = pneg %p207
      %p287 = pneg %p204
      %p288 = scmp.lt.s32.totalorder %s22, 1
      %s289 = scalar_select %p288, %s22, 1
      %p290 = scmp.lt.s32.totalorder %s23, 1
      %s291 = scalar_select %p290, %s23, 1
      %s292 = smul.addr %s291, 16
      %s293 = smul.addr %s289, 32
      %s294 = sadd.s32 %s292, %s293
      %s295 = smul.addr %s294, 4
      %s296 = scalar_lea.vmem %s7, %s295
      %p297 = scmp.lt.s32.totalorder %s22, 1
      %s298 = scalar_select %p297, %s22, 1
      %p299 = scmp.lt.s32.totalorder %s23, 1
      %s300 = scalar_select %p299, %s23, 1
      %s301 = smul.addr %s300, 20
      %s302 = smul.addr %s298, 40
      %s303 = sadd.s32 %s301, %s302
      %s304 = smul.addr %s303, 4
      %s305 = scalar_lea.vmem %s0, %s304
      %p306 = scmp.lt.s32.totalorder %s22, 1
      %s307 = scalar_select %p306, %s22, 1
      %p308 = scmp.lt.s32.totalorder %s23, 1
      %s309 = scalar_select %p308, %s23, 1
      %s310 = smul.addr %s309, 16
      %s311 = smul.addr %s307, 32
      %s312 = sadd.s32 %s310, %s311
      %s313 = smul.addr %s312, 4
      %s314 = scalar_lea.vmem %s7, %s313
      %v316 = vld [vmem:[%s305] sm:$0xf]
      %v317 = vld [vmem:[%s305 + $0x4] sm:$0xf]
      %v318 = vld [vmem:[%s305 + $0x8] sm:$0xf]
      %v319 = vld [vmem:[%s305 + $0xc] sm:$0xf]
      %v320 = vld [vmem:[%s305 + $0x10] sm:$0xf]
      %v321 = vld [vmem:[%s305 + $0x14] sm:$0xf]
      %v322 = vld [vmem:[%s305 + $0x18] sm:$0xf]
      %v323 = vld [vmem:[%s305 + $0x1c] sm:$0xf]
      %v324 = vld [vmem:[%s305 + $0x20] sm:$0xf]
      %v325 = vld [vmem:[%s305 + $0x24] sm:$0xf]
      %v326 = vld [vmem:[%s305 + $0x28] sm:$0xf]
      %v327 = vld [vmem:[%s305 + $0x2c] sm:$0xf]
      %v328 = vld [vmem:[%s305 + $0x30] sm:$0xf]
      %v329 = vld [vmem:[%s305 + $0x34] sm:$0xf]
      %v330 = vld [vmem:[%s305 + $0x38] sm:$0xf]
      %v331 = vld [vmem:[%s305 + $0x3c] sm:$0xf]
      %v332 = vld [vmem:[%s305 + $0x40] sm:$0xf]
      %v333 = vld [vmem:[%s305 + $0x44] sm:$0xf]
      %v334 = vld [vmem:[%s305 + $0x48] sm:$0xf]
      %v335 = vld [vmem:[%s305 + $0x4c] sm:$0xf]
      %v336 = vld [vmem:[%s1] sm:$0x3]
      %v337 = vld [vmem:[%s2] sm:$0x1]
      %v339 = vlaneseq
      %v340 = vshrl.u32 %v339, 7
      %v341 = vsub.s32 0, %v340
      %v342 = vrot.slane %v337, %v341
      %v364 = vunpack.c.l.b16 %v316
      %v365 = vunpack.c.l.b16 %v317
      %v366 = vunpack.c.l.b16 %v318
      %v367 = vunpack.c.l.b16 %v319
      %v368 = vunpack.c.l.b16 %v320
      %v369 = vunpack.c.l.b16 %v321
      %v370 = vunpack.c.l.b16 %v322
      %v371 = vunpack.c.l.b16 %v323
      %v372 = vunpack.c.l.b16 %v324
      %v373 = vunpack.c.l.b16 %v325
      %v374 = vunpack.c.l.b16 %v326
      %v375 = vunpack.c.l.b16 %v327
      %v376 = vunpack.c.l.b16 %v328
      %v377 = vunpack.c.l.b16 %v329
      %v378 = vunpack.c.l.b16 %v330
      %v379 = vunpack.c.l.b16 %v331
      %v380 = vunpack.c.l.b16 %v332
      %v381 = vunpack.c.l.b16 %v333
      %v382 = vunpack.c.l.b16 %v334
      %v383 = vunpack.c.l.b16 %v335
      %v384 = vpack.c.b16 %v365, %v364
      %v385 = vpack.c.b16 %v367, %v366
      %v386 = vpack.c.b16 %v369, %v368
      %v387 = vpack.c.b16 %v371, %v370
      %v388 = vpack.c.b16 %v373, %v372
      %v389 = vpack.c.b16 %v375, %v374
      %v390 = vpack.c.b16 %v377, %v376
      %v391 = vpack.c.b16 %v379, %v378
      %v392 = vpack.c.b16 %v381, %v380
      %v393 = vpack.c.b16 %v383, %v382
      %vm394 = vcmask 31744
      %v396 = vsel %vm394, %v384, 0
      %v399 = vsel %vm394, %v385, 0
      %v402 = vsel %vm394, %v386, 0
      %v405 = vsel %vm394, %v387, 0
      %v408 = vsel %vm394, %v388, 0
      %v411 = vsel %vm394, %v389, 0
      %v414 = vsel %vm394, %v390, 0
      %v417 = vsel %vm394, %v391, 0
      %v420 = vsel %vm394, %v392, 0
      %v423 = vsel %vm394, %v393, 0
      %vm425 = vcmask 1041408
      %v427 = vsel %vm425, %v336, 0
      %429 = vmatprep.subr.bf16.mxu0 0
      %430 = vmatpush1.bf16.msra.mxu0 %v427
      %431 = vmatprep.subr.bf16.mxu0 0
      %432 = vmatpush1.bf16.msra.mxu0 0
      %433 = vmatprep.subr.bf16.mxu0 0
      %434 = vmatpush1.bf16.msra.mxu0 0
      %435 = vmatprep.subr.bf16.mxu0 0
      %436 = vmatpush1.bf16.msra.mxu0 0
      %437 = vmatprep.subr.bf16.mxu0 0
      %438 = vmatpush1.bf16.msra.mxu0 0
      %439 = vmatprep.subr.bf16.mxu0 0
      %440 = vmatpush1.bf16.msra.mxu0 0
      %441 = vmatprep.subr.bf16.mxu0 0
      %442 = vmatpush1.bf16.msra.mxu0 0
      %443 = vmatprep.subr.bf16.mxu0 0
      %444 = vmatpush1.bf16.msra.mxu0 0
      %445 = vmatprep.subr.bf16.mxu0 0
      %446 = vmatpush1.bf16.msra.mxu0 0
      %447 = vmatprep.subr.bf16.mxu0 0
      %448 = vmatpush1.bf16.msra.mxu0 0
      %449 = vmatprep.subr.bf16.mxu0 0
      %450 = vmatpush1.bf16.msra.mxu0 0
      %451 = vmatprep.subr.bf16.mxu0 0
      %452 = vmatpush1.bf16.msra.mxu0 0
      %453 = vmatprep.subr.bf16.mxu0 0
      %454 = vmatpush1.bf16.msra.mxu0 0
      %455 = vmatprep.subr.bf16.mxu0 0
      %456 = vmatpush1.bf16.msra.mxu0 0
      %457 = vmatprep.subr.bf16.mxu0 0
      %458 = vmatpush1.bf16.msra.mxu0 0
      %459 = vmatprep.subr.bf16.mxu0 0
      %460 = vmatpush1.bf16.msra.mxu0 0
      %461 = vmatprep.mubr.bf16.mxu0 0
      %462 = vmatmul.mubr.bf16.gmra.mrb[0].mxu0 %v396
      %v463 = vpop.f32.mrb[0].mxu0
      %v464 = vadd.f32 %v342, %v463
      %v465 = vpop.f32.mrb[0].mxu0
      %v466 = vpop.f32.mrb[0].mxu0
      %v467 = vadd.f32 %v342, %v466
      %v468 = vpop.f32.mrb[0].mxu0
      %469 = vmatprep.mubr.bf16.mxu0 0
      %470 = vmatmul.mubr.bf16.gmra.mrb[0].mxu0 %v399
      %v471 = vpop.f32.mrb[0].mxu0
      %v472 = vadd.f32 %v342, %v471
      %v473 = vpop.f32.mrb[0].mxu0
      %v474 = vpop.f32.mrb[0].mxu0
      %v475 = vadd.f32 %v342, %v474
      %v476 = vpop.f32.mrb[0].mxu0
      %477 = vmatprep.mubr.bf16.mxu0 0
      %478 = vmatmul.mubr.bf16.gmra.mrb[0].mxu0 %v402
      %v479 = vpop.f32.mrb[0].mxu0
      %v480 = vadd.f32 %v342, %v479
      %v481 = vpop.f32.mrb[0].mxu0
      %v482 = vpop.f32.mrb[0].mxu0
      %v483 = vadd.f32 %v342, %v482
      %v484 = vpop.f32.mrb[0].mxu0
      %485 = vmatprep.mubr.bf16.mxu0 0
      %486 = vmatmul.mubr.bf16.gmra.mrb[0].mxu0 %v405
      %v487 = vpop.f32.mrb[0].mxu0
      %v488 = vadd.f32 %v342, %v487
      %v489 = vpop.f32.mrb[0].mxu0
      %v490 = vpop.f32.mrb[0].mxu0
      %v491 = vadd.f32 %v342, %v490
      %v492 = vpop.f32.mrb[0].mxu0
      %493 = vmatprep.mubr.bf16.mxu0 0
      %494 = vmatmul.mubr.bf16.gmra.mrb[0].mxu0 %v408
      %v495 = vpop.f32.mrb[0].mxu0
      %v496 = vadd.f32 %v342, %v495
      %v497 = vpop.f32.mrb[0].mxu0
      %v498 = vpop.f32.mrb[0].mxu0
      %v499 = vadd.f32 %v342, %v498
      %v500 = vpop.f32.mrb[0].mxu0
      %501 = vmatprep.mubr.bf16.mxu0 0
      %502 = vmatmul.mubr.bf16.gmra.mrb[0].mxu0 %v411
      %v503 = vpop.f32.mrb[0].mxu0
      %v504 = vadd.f32 %v342, %v503
      %v505 = vpop.f32.mrb[0].mxu0
      %v506 = vpop.f32.mrb[0].mxu0
      %v507 = vadd.f32 %v342, %v506
      %v508 = vpop.f32.mrb[0].mxu0
      %509 = vmatprep.mubr.bf16.mxu0 0
      %510 = vmatmul.mubr.bf16.gmra.mrb[0].mxu0 %v414
      %v511 = vpop.f32.mrb[0].mxu0
      %v512 = vadd.f32 %v342, %v511
      %v513 = vpop.f32.mrb[0].mxu0
      %v514 = vpop.f32.mrb[0].mxu0
      %v515 = vadd.f32 %v342, %v514
      %v516 = vpop.f32.mrb[0].mxu0
      %517 = vmatprep.mubr.bf16.mxu0 0
      %518 = vmatmul.mubr.bf16.gmra.mrb[0].mxu0 %v417
      %v519 = vpop.f32.mrb[0].mxu0
      %v520 = vadd.f32 %v342, %v519
      %v521 = vpop.f32.mrb[0].mxu0
      %v522 = vpop.f32.mrb[0].mxu0
      %v523 = vadd.f32 %v342, %v522
      %v524 = vpop.f32.mrb[0].mxu0
      %525 = vmatprep.mubr.bf16.mxu0 0
      %526 = vmatmul.mubr.bf16.gmra.mrb[0].mxu0 %v420
      %v527 = vpop.f32.mrb[0].mxu0
      %v528 = vadd.f32 %v342, %v527
      %v529 = vpop.f32.mrb[0].mxu0
      %v530 = vpop.f32.mrb[0].mxu0
      %v531 = vadd.f32 %v342, %v530
      %v532 = vpop.f32.mrb[0].mxu0
      %533 = vmatprep.mubr.bf16.mxu0 0
      %534 = vmatmul.mubr.bf16.gmra.mrb[0].mxu0 %v423
      %v535 = vpop.f32.mrb[0].mxu0
      %v536 = vadd.f32 %v342, %v535
      %v537 = vpop.f32.mrb[0].mxu0
      %v538 = vpop.f32.mrb[0].mxu0
      %v539 = vadd.f32 %v342, %v538
      %v540 = vpop.f32.mrb[0].mxu0
      %541 = vdwg.mxu0
      %v542 = vmax.f32 %v464, 0.0
      %v543 = vmax.f32 %v467, 0.0
      %v544 = vmax.f32 %v472, 0.0
      %v545 = vmax.f32 %v475, 0.0
      %v546 = vmax.f32 %v480, 0.0
      %v547 = vmax.f32 %v483, 0.0
      %v548 = vmax.f32 %v488, 0.0
      %v549 = vmax.f32 %v491, 0.0
      %v550 = vmax.f32 %v496, 0.0
      %v551 = vmax.f32 %v499, 0.0
      %v552 = vmax.f32 %v504, 0.0
      %v553 = vmax.f32 %v507, 0.0
      %v554 = vmax.f32 %v512, 0.0
      %v555 = vmax.f32 %v515, 0.0
      %v556 = vmax.f32 %v520, 0.0
      %v557 = vmax.f32 %v523, 0.0
      %v558 = vmax.f32 %v528, 0.0
      %v559 = vmax.f32 %v531, 0.0
      %v560 = vmax.f32 %v536, 0.0
      %v561 = vmax.f32 %v539, 0.0
      %v562 = vmin.f32 %v542, 6.0
      %v563 = vmin.f32 %v543, 6.0
      %v564 = vmin.f32 %v544, 6.0
      %v565 = vmin.f32 %v545, 6.0
      %v566 = vmin.f32 %v546, 6.0
      %v567 = vmin.f32 %v547, 6.0
      %v568 = vmin.f32 %v548, 6.0
      %v569 = vmin.f32 %v549, 6.0
      %v570 = vmin.f32 %v550, 6.0
      %v571 = vmin.f32 %v551, 6.0
      %v572 = vmin.f32 %v552, 6.0
      %v573 = vmin.f32 %v553, 6.0
      %v574 = vmin.f32 %v554, 6.0
      %v575 = vmin.f32 %v555, 6.0
      %v576 = vmin.f32 %v556, 6.0
      %v577 = vmin.f32 %v557, 6.0
      %v578 = vmin.f32 %v558, 6.0
      %v579 = vmin.f32 %v559, 6.0
      %v580 = vmin.f32 %v560, 6.0
      %v581 = vmin.f32 %v561, 6.0
      %s582 = smul.u32 %s23, 8
      %v583 = vstv %s582
      %v584 = vadd.s32 %v583, 1
      %v585 = vadd.s32 %v583, 2
      %v586 = vadd.s32 %v583, 3
      %v587 = vadd.s32 %v583, 4
      %v588 = vadd.s32 %v583, 5
      %v589 = vadd.s32 %v583, 6
      %v590 = vadd.s32 %v583, 7
      %v591 = vadd.s32 %v583, 8
      %v592 = vadd.s32 %v583, 9
      %vm593 = vcmp.ge.s32.totalorder %v583, 1
      %vm594 = vcmp.ge.s32.totalorder %v584, 1
      %vm595 = vcmp.ge.s32.totalorder %v585, 1
      %vm596 = vcmp.ge.s32.totalorder %v586, 1
      %vm597 = vcmp.ge.s32.totalorder %v587, 1
      %vm598 = vcmp.ge.s32.totalorder %v588, 1
      %vm599 = vcmp.ge.s32.totalorder %v589, 1
      %vm600 = vcmp.ge.s32.totalorder %v590, 1
      %vm601 = vcmp.ge.s32.totalorder %v591, 1
      %vm602 = vcmp.ge.s32.totalorder %v592, 1
      %vm603 = vcmp.le.s32.totalorder %v583, 16
      %vm604 = vcmp.le.s32.totalorder %v584, 16
      %vm605 = vcmp.le.s32.totalorder %v585, 16
      %vm606 = vcmp.le.s32.totalorder %v586, 16
      %vm607 = vcmp.le.s32.totalorder %v587, 16
      %vm608 = vcmp.le.s32.totalorder %v588, 16
      %vm609 = vcmp.le.s32.totalorder %v589, 16
      %vm610 = vcmp.le.s32.totalorder %v590, 16
      %vm611 = vcmp.le.s32.totalorder %v591, 16
      %vm612 = vcmp.le.s32.totalorder %v592, 16
      %vm613 = vmand %vm593, %vm603
      %vm614 = vmand %vm594, %vm604
      %vm615 = vmand %vm595, %vm605
      %vm616 = vmand %vm596, %vm606
      %vm617 = vmand %vm597, %vm607
      %vm618 = vmand %vm598, %vm608
      %vm619 = vmand %vm599, %vm609
      %vm620 = vmand %vm600, %vm610
      %vm621 = vmand %vm601, %vm611
      %vm622 = vmand %vm602, %vm612
      %v623 = vsel %vm613, 1, 0
      %v624 = vsel %vm614, 1, 0
      %v625 = vsel %vm615, 1, 0
      %v626 = vsel %vm616, 1, 0
      %v627 = vsel %vm617, 1, 0
      %v628 = vsel %vm618, 1, 0
      %v629 = vsel %vm619, 1, 0
      %v630 = vsel %vm620, 1, 0
      %v631 = vsel %vm621, 1, 0
      %v632 = vsel %vm622, 1, 0
      %vm633 = vcmp.eq.s32.totalorder %v623, 1
      %vm634 = vcmp.eq.s32.totalorder %v624, 1
      %vm635 = vcmp.eq.s32.totalorder %v625, 1
      %vm636 = vcmp.eq.s32.totalorder %v626, 1
      %vm637 = vcmp.eq.s32.totalorder %v627, 1
      %vm638 = vcmp.eq.s32.totalorder %v628, 1
      %vm639 = vcmp.eq.s32.totalorder %v629, 1
      %vm640 = vcmp.eq.s32.totalorder %v630, 1
      %vm641 = vcmp.eq.s32.totalorder %v631, 1
      %vm642 = vcmp.eq.s32.totalorder %v632, 1
      %v643 = vsel %vm633, %v562, 0.0
      %v644 = vsel %vm633, %v563, 0.0
      %v645 = vsel %vm634, %v564, 0.0
      %v646 = vsel %vm634, %v565, 0.0
      %v647 = vsel %vm635, %v566, 0.0
      %v648 = vsel %vm635, %v567, 0.0
      %v649 = vsel %vm636, %v568, 0.0
      %v650 = vsel %vm636, %v569, 0.0
      %v651 = vsel %vm637, %v570, 0.0
      %v652 = vsel %vm637, %v571, 0.0
      %v653 = vsel %vm638, %v572, 0.0
      %v654 = vsel %vm638, %v573, 0.0
      %v655 = vsel %vm639, %v574, 0.0
      %v656 = vsel %vm639, %v575, 0.0
      %v657 = vsel %vm640, %v576, 0.0
      %v658 = vsel %vm640, %v577, 0.0
      %v659 = vsel %vm641, %v578, 0.0
      %v660 = vsel %vm641, %v579, 0.0
      %v661 = vsel %vm642, %v580, 0.0
      %v662 = vsel %vm642, %v581, 0.0
      %v663 = vlaneseq
      %v664 = vshrl.u32 %v663, 7
      %v665 = vadd.s32 %v664, 8
      %vm666 = vcmp.ge.s32.totalorder %v664, 1
      %vm667 = vcmp.ge.s32.totalorder %v665, 1
      %v668 = vrot.slane %v643, 7
      %v669 = vrot.slane %v645, 7
      %v670 = vrot.slane %v647, 7
      %v671 = vrot.slane %v649, 7
      %v672 = vrot.slane %v651, 7
      %v673 = vrot.slane %v653, 7
      %v674 = vrot.slane %v655, 7
      %v675 = vrot.slane %v657, 7
      %v676 = vrot.slane %v659, 7
      %v677 = vrot.slane %v661, 7
      %v678 = vrot.slane %v644, 7
      %v679 = vrot.slane %v646, 7
      %v680 = vrot.slane %v648, 7
      %v681 = vrot.slane %v650, 7
      %v682 = vrot.slane %v652, 7
      %v683 = vrot.slane %v654, 7
      %v684 = vrot.slane %v656, 7
      %v685 = vrot.slane %v658, 7
      %v686 = vrot.slane %v660, 7
      %v687 = vrot.slane %v662, 7
      %vm688 = vcmp.lt.s32.totalorder %v664, 1
      %v689 = vsel %vm688, %v668, %v678
      %v690 = vsel %vm688, %v669, %v679
      %v691 = vsel %vm688, %v670, %v680
      %v692 = vsel %vm688, %v671, %v681
      %v693 = vsel %vm688, %v672, %v682
      %v694 = vsel %vm688, %v673, %v683
      %v695 = vsel %vm688, %v674, %v684
      %v696 = vsel %vm688, %v675, %v685
      %v697 = vsel %vm688, %v676, %v686
      %v698 = vsel %vm688, %v677, %v687
      %v699 = vsel %vm688, %v678, %v668
      %v700 = vsel %vm688, %v679, %v669
      %v701 = vsel %vm688, %v680, %v670
      %v702 = vsel %vm688, %v681, %v671
      %v703 = vsel %vm688, %v682, %v672
      %v704 = vsel %vm688, %v683, %v673
      %v705 = vsel %vm688, %v684, %v674
      %v706 = vsel %vm688, %v685, %v675
      %v707 = vsel %vm688, %v686, %v676
      %v708 = vsel %vm688, %v687, %v677
      %v709 = vsel %vm666, 1, 0
      %v710 = vsel %vm667, 1, 0
      %vm711 = vcmp.eq.s32.totalorder %v709, 1
      %vm712 = vcmp.eq.s32.totalorder %v710, 1
      %v713 = vsel %vm711, %v699, 0.0
      %v714 = vsel %vm712, %v689, 0.0
      %v715 = vsel %vm711, %v700, 0.0
      %v716 = vsel %vm712, %v690, 0.0
      %v717 = vsel %vm711, %v701, 0.0
      %v718 = vsel %vm712, %v691, 0.0
      %v719 = vsel %vm711, %v702, 0.0
      %v720 = vsel %vm712, %v692, 0.0
      %v721 = vsel %vm711, %v703, 0.0
      %v722 = vsel %vm712, %v693, 0.0
      %v723 = vsel %vm711, %v704, 0.0
      %v724 = vsel %vm712, %v694, 0.0
      %v725 = vsel %vm711, %v705, 0.0
      %v726 = vsel %vm712, %v695, 0.0
      %v727 = vsel %vm711, %v706, 0.0
      %v728 = vsel %vm712, %v696, 0.0
      %v729 = vsel %vm711, %v707, 0.0
      %v730 = vsel %vm712, %v697, 0.0
      %v731 = vsel %vm711, %v708, 0.0
      %v732 = vsel %vm712, %v698, 0.0
      %vm733 = vcmp.le.s32.totalorder %v664, 14
      %vm734 = vcmp.le.s32.totalorder %v665, 14
      %v735 = vrot.slane %v643, 1
      %v736 = vrot.slane %v645, 1
      %v737 = vrot.slane %v647, 1
      %v738 = vrot.slane %v649, 1
      %v739 = vrot.slane %v651, 1
      %v740 = vrot.slane %v653, 1
      %v741 = vrot.slane %v655, 1
      %v742 = vrot.slane %v657, 1
      %v743 = vrot.slane %v659, 1
      %v744 = vrot.slane %v661, 1
      %v745 = vrot.slane %v644, 1
      %v746 = vrot.slane %v646, 1
      %v747 = vrot.slane %v648, 1
      %v748 = vrot.slane %v650, 1
      %v749 = vrot.slane %v652, 1
      %v750 = vrot.slane %v654, 1
      %v751 = vrot.slane %v656, 1
      %v752 = vrot.slane %v658, 1
      %v753 = vrot.slane %v660, 1
      %v754 = vrot.slane %v662, 1
      %vm755 = vcmp.lt.s32.totalorder %v664, 7
      %v756 = vsel %vm755, %v735, %v745
      %v757 = vsel %vm755, %v736, %v746
      %v758 = vsel %vm755, %v737, %v747
      %v759 = vsel %vm755, %v738, %v748
      %v760 = vsel %vm755, %v739, %v749
      %v761 = vsel %vm755, %v740, %v750
      %v762 = vsel %vm755, %v741, %v751
      %v763 = vsel %vm755, %v742, %v752
      %v764 = vsel %vm755, %v743, %v753
      %v765 = vsel %vm755, %v744, %v754
      %v766 = vsel %vm755, %v745, %v735
      %v767 = vsel %vm755, %v746, %v736
      %v768 = vsel %vm755, %v747, %v737
      %v769 = vsel %vm755, %v748, %v738
      %v770 = vsel %vm755, %v749, %v739
      %v771 = vsel %vm755, %v750, %v740
      %v772 = vsel %vm755, %v751, %v741
      %v773 = vsel %vm755, %v752, %v742
      %v774 = vsel %vm755, %v753, %v743
      %v775 = vsel %vm755, %v754, %v744
      %v776 = vsel %vm733, 1, 0
      %v777 = vsel %vm734, 1, 0
      %vm778 = vcmp.eq.s32.totalorder %v776, 1
      %vm779 = vcmp.eq.s32.totalorder %v777, 1
      %v780 = vsel %vm778, %v756, 0.0
      %v781 = vsel %vm779, %v766, 0.0
      %v782 = vsel %vm778, %v757, 0.0
      %v783 = vsel %vm779, %v767, 0.0
      %v784 = vsel %vm778, %v758, 0.0
      %v785 = vsel %vm779, %v768, 0.0
      %v786 = vsel %vm778, %v759, 0.0
      %v787 = vsel %vm779, %v769, 0.0
      %v788 = vsel %vm778, %v760, 0.0
      %v789 = vsel %vm779, %v770, 0.0
      %v790 = vsel %vm778, %v761, 0.0
      %v791 = vsel %vm779, %v771, 0.0
      %v792 = vsel %vm778, %v762, 0.0
      %v793 = vsel %vm779, %v772, 0.0
      %v794 = vsel %vm778, %v763, 0.0
      %v795 = vsel %vm779, %v773, 0.0
      %v796 = vsel %vm778, %v764, 0.0
      %v797 = vsel %vm779, %v774, 0.0
      %v798 = vsel %vm778, %v765, 0.0
      %v799 = vsel %vm779, %v775, 0.0
      %v800 = vld [vmem:[%s3] sm:$0x7]
      %v801 = vld [vmem:[%s3 + $0x4] sm:$0x7]
      %v802 = vld [vmem:[%s3 + $0x8] sm:$0x7]
      %v803 = vlaneseq
      %v804 = vshrl.u32 %v803, 7
      %v805 = vsub.s32 0, %v804
      %v806 = vrot.slane %v800, %v805
      %v807 = vmul.f32 %v713, %v806
      %v808 = vmul.f32 %v714, %v806
      %v809 = vmul.f32 %v715, %v806
      %v810 = vmul.f32 %v716, %v806
      %v811 = vmul.f32 %v717, %v806
      %v812 = vmul.f32 %v718, %v806
      %v813 = vmul.f32 %v719, %v806
      %v814 = vmul.f32 %v720, %v806
      %v815 = vmul.f32 %v721, %v806
      %v816 = vmul.f32 %v722, %v806
      %v817 = vmul.f32 %v723, %v806
      %v818 = vmul.f32 %v724, %v806
      %v819 = vmul.f32 %v725, %v806
      %v820 = vmul.f32 %v726, %v806
      %v821 = vmul.f32 %v727, %v806
      %v822 = vmul.f32 %v728, %v806
      %v823 = vlaneseq
      %v824 = vshrl.u32 %v823, 7
      %v825 = vsub.s32 1, %v824
      %v826 = vrot.slane %v800, %v825
      %v827 = vmul.f32 %v643, %v826
      %v828 = vmul.f32 %v644, %v826
      %v829 = vmul.f32 %v645, %v826
      %v830 = vmul.f32 %v646, %v826
      %v831 = vmul.f32 %v647, %v826
      %v832 = vmul.f32 %v648, %v826
      %v833 = vmul.f32 %v649, %v826
      %v834 = vmul.f32 %v650, %v826
      %v835 = vmul.f32 %v651, %v826
      %v836 = vmul.f32 %v652, %v826
      %v837 = vmul.f32 %v653, %v826
      %v838 = vmul.f32 %v654, %v826
      %v839 = vmul.f32 %v655, %v826
      %v840 = vmul.f32 %v656, %v826
      %v841 = vmul.f32 %v657, %v826
      %v842 = vmul.f32 %v658, %v826
      %v843 = vadd.f32 %v807, %v827
      %v844 = vadd.f32 %v808, %v828
      %v845 = vadd.f32 %v809, %v829
      %v846 = vadd.f32 %v810, %v830
      %v847 = vadd.f32 %v811, %v831
      %v848 = vadd.f32 %v812, %v832
      %v849 = vadd.f32 %v813, %v833
      %v850 = vadd.f32 %v814, %v834
      %v851 = vadd.f32 %v815, %v835
      %v852 = vadd.f32 %v816, %v836
      %v853 = vadd.f32 %v817, %v837
      %v854 = vadd.f32 %v818, %v838
      %v855 = vadd.f32 %v819, %v839
      %v856 = vadd.f32 %v820, %v840
      %v857 = vadd.f32 %v821, %v841
      %v858 = vadd.f32 %v822, %v842
      %v859 = vlaneseq
      %v860 = vshrl.u32 %v859, 7
      %v861 = vsub.s32 2, %v860
      %v862 = vrot.slane %v800, %v861
      %v863 = vmul.f32 %v780, %v862
      %v864 = vmul.f32 %v781, %v862
      %v865 = vmul.f32 %v782, %v862
      %v866 = vmul.f32 %v783, %v862
      %v867 = vmul.f32 %v784, %v862
      %v868 = vmul.f32 %v785, %v862
      %v869 = vmul.f32 %v786, %v862
      %v870 = vmul.f32 %v787, %v862
      %v871 = vmul.f32 %v788, %v862
      %v872 = vmul.f32 %v789, %v862
      %v873 = vmul.f32 %v790, %v862
      %v874 = vmul.f32 %v791, %v862
      %v875 = vmul.f32 %v792, %v862
      %v876 = vmul.f32 %v793, %v862
      %v877 = vmul.f32 %v794, %v862
      %v878 = vmul.f32 %v795, %v862
      %v879 = vadd.f32 %v843, %v863
      %v880 = vadd.f32 %v844, %v864
      %v881 = vadd.f32 %v845, %v865
      %v882 = vadd.f32 %v846, %v866
      %v883 = vadd.f32 %v847, %v867
      %v884 = vadd.f32 %v848, %v868
      %v885 = vadd.f32 %v849, %v869
      %v886 = vadd.f32 %v850, %v870
      %v887 = vadd.f32 %v851, %v871
      %v888 = vadd.f32 %v852, %v872
      %v889 = vadd.f32 %v853, %v873
      %v890 = vadd.f32 %v854, %v874
      %v891 = vadd.f32 %v855, %v875
      %v892 = vadd.f32 %v856, %v876
      %v893 = vadd.f32 %v857, %v877
      %v894 = vadd.f32 %v858, %v878
      %v895 = vlaneseq
      %v896 = vshrl.u32 %v895, 7
      %v897 = vsub.s32 0, %v896
      %v898 = vrot.slane %v801, %v897
      %v899 = vmul.f32 %v715, %v898
      %v900 = vmul.f32 %v716, %v898
      %v901 = vmul.f32 %v717, %v898
      %v902 = vmul.f32 %v718, %v898
      %v903 = vmul.f32 %v719, %v898
      %v904 = vmul.f32 %v720, %v898
      %v905 = vmul.f32 %v721, %v898
      %v906 = vmul.f32 %v722, %v898
      %v907 = vmul.f32 %v723, %v898
      %v908 = vmul.f32 %v724, %v898
      %v909 = vmul.f32 %v725, %v898
      %v910 = vmul.f32 %v726, %v898
      %v911 = vmul.f32 %v727, %v898
      %v912 = vmul.f32 %v728, %v898
      %v913 = vmul.f32 %v729, %v898
      %v914 = vmul.f32 %v730, %v898
      %v915 = vadd.f32 %v879, %v899
      %v916 = vadd.f32 %v880, %v900
      %v917 = vadd.f32 %v881, %v901
      %v918 = vadd.f32 %v882, %v902
      %v919 = vadd.f32 %v883, %v903
      %v920 = vadd.f32 %v884, %v904
      %v921 = vadd.f32 %v885, %v905
      %v922 = vadd.f32 %v886, %v906
      %v923 = vadd.f32 %v887, %v907
      %v924 = vadd.f32 %v888, %v908
      %v925 = vadd.f32 %v889, %v909
      %v926 = vadd.f32 %v890, %v910
      %v927 = vadd.f32 %v891, %v911
      %v928 = vadd.f32 %v892, %v912
      %v929 = vadd.f32 %v893, %v913
      %v930 = vadd.f32 %v894, %v914
      %v931 = vlaneseq
      %v932 = vshrl.u32 %v931, 7
      %v933 = vsub.s32 1, %v932
      %v934 = vrot.slane %v801, %v933
      %v935 = vmul.f32 %v645, %v934
      %v936 = vmul.f32 %v646, %v934
      %v937 = vmul.f32 %v647, %v934
      %v938 = vmul.f32 %v648, %v934
      %v939 = vmul.f32 %v649, %v934
      %v940 = vmul.f32 %v650, %v934
      %v941 = vmul.f32 %v651, %v934
      %v942 = vmul.f32 %v652, %v934
      %v943 = vmul.f32 %v653, %v934
      %v944 = vmul.f32 %v654, %v934
      %v945 = vmul.f32 %v655, %v934
      %v946 = vmul.f32 %v656, %v934
      %v947 = vmul.f32 %v657, %v934
      %v948 = vmul.f32 %v658, %v934
      %v949 = vmul.f32 %v659, %v934
      %v950 = vmul.f32 %v660, %v934
      %v951 = vadd.f32 %v915, %v935
      %v952 = vadd.f32 %v916, %v936
      %v953 = vadd.f32 %v917, %v937
      %v954 = vadd.f32 %v918, %v938
      %v955 = vadd.f32 %v919, %v939
      %v956 = vadd.f32 %v920, %v940
      %v957 = vadd.f32 %v921, %v941
      %v958 = vadd.f32 %v922, %v942
      %v959 = vadd.f32 %v923, %v943
      %v960 = vadd.f32 %v924, %v944
      %v961 = vadd.f32 %v925, %v945
      %v962 = vadd.f32 %v926, %v946
      %v963 = vadd.f32 %v927, %v947
      %v964 = vadd.f32 %v928, %v948
      %v965 = vadd.f32 %v929, %v949
      %v966 = vadd.f32 %v930, %v950
      %v967 = vlaneseq
      %v968 = vshrl.u32 %v967, 7
      %v969 = vsub.s32 2, %v968
      %v970 = vrot.slane %v801, %v969
      %v971 = vmul.f32 %v782, %v970
      %v972 = vmul.f32 %v783, %v970
      %v973 = vmul.f32 %v784, %v970
      %v974 = vmul.f32 %v785, %v970
      %v975 = vmul.f32 %v786, %v970
      %v976 = vmul.f32 %v787, %v970
      %v977 = vmul.f32 %v788, %v970
      %v978 = vmul.f32 %v789, %v970
      %v979 = vmul.f32 %v790, %v970
      %v980 = vmul.f32 %v791, %v970
      %v981 = vmul.f32 %v792, %v970
      %v982 = vmul.f32 %v793, %v970
      %v983 = vmul.f32 %v794, %v970
      %v984 = vmul.f32 %v795, %v970
      %v985 = vmul.f32 %v796, %v970
      %v986 = vmul.f32 %v797, %v970
      %v987 = vadd.f32 %v951, %v971
      %v988 = vadd.f32 %v952, %v972
      %v989 = vadd.f32 %v953, %v973
      %v990 = vadd.f32 %v954, %v974
      %v991 = vadd.f32 %v955, %v975
      %v992 = vadd.f32 %v956, %v976
      %v993 = vadd.f32 %v957, %v977
      %v994 = vadd.f32 %v958, %v978
      %v995 = vadd.f32 %v959, %v979
      %v996 = vadd.f32 %v960, %v980
      %v997 = vadd.f32 %v961, %v981
      %v998 = vadd.f32 %v962, %v982
      %v999 = vadd.f32 %v963, %v983
      %v1000 = vadd.f32 %v964, %v984
      %v1001 = vadd.f32 %v965, %v985
      %v1002 = vadd.f32 %v966, %v986
      %v1003 = vlaneseq
      %v1004 = vshrl.u32 %v1003, 7
      %v1005 = vsub.s32 0, %v1004
      %v1006 = vrot.slane %v802, %v1005
      %v1007 = vmul.f32 %v717, %v1006
      %v1008 = vmul.f32 %v718, %v1006
      %v1009 = vmul.f32 %v719, %v1006
      %v1010 = vmul.f32 %v720, %v1006
      %v1011 = vmul.f32 %v721, %v1006
      %v1012 = vmul.f32 %v722, %v1006
      %v1013 = vmul.f32 %v723, %v1006
      %v1014 = vmul.f32 %v724, %v1006
      %v1015 = vmul.f32 %v725, %v1006
      %v1016 = vmul.f32 %v726, %v1006
      %v1017 = vmul.f32 %v727, %v1006
      %v1018 = vmul.f32 %v728, %v1006
      %v1019 = vmul.f32 %v729, %v1006
      %v1020 = vmul.f32 %v730, %v1006
      %v1021 = vmul.f32 %v731, %v1006
      %v1022 = vmul.f32 %v732, %v1006
      %v1023 = vadd.f32 %v987, %v1007
      %v1024 = vadd.f32 %v988, %v1008
      %v1025 = vadd.f32 %v989, %v1009
      %v1026 = vadd.f32 %v990, %v1010
      %v1027 = vadd.f32 %v991, %v1011
      %v1028 = vadd.f32 %v992, %v1012
      %v1029 = vadd.f32 %v993, %v1013
      %v1030 = vadd.f32 %v994, %v1014
      %v1031 = vadd.f32 %v995, %v1015
      %v1032 = vadd.f32 %v996, %v1016
      %v1033 = vadd.f32 %v997, %v1017
      %v1034 = vadd.f32 %v998, %v1018
      %v1035 = vadd.f32 %v999, %v1019
      %v1036 = vadd.f32 %v1000, %v1020
      %v1037 = vadd.f32 %v1001, %v1021
      %v1038 = vadd.f32 %v1002, %v1022
      %v1039 = vlaneseq
      %v1040 = vshrl.u32 %v1039, 7
      %v1041 = vsub.s32 1, %v1040
      %v1042 = vrot.slane %v802, %v1041
      %v1043 = vmul.f32 %v647, %v1042
      %v1044 = vmul.f32 %v648, %v1042
      %v1045 = vmul.f32 %v649, %v1042
      %v1046 = vmul.f32 %v650, %v1042
      %v1047 = vmul.f32 %v651, %v1042
      %v1048 = vmul.f32 %v652, %v1042
      %v1049 = vmul.f32 %v653, %v1042
      %v1050 = vmul.f32 %v654, %v1042
      %v1051 = vmul.f32 %v655, %v1042
      %v1052 = vmul.f32 %v656, %v1042
      %v1053 = vmul.f32 %v657, %v1042
      %v1054 = vmul.f32 %v658, %v1042
      %v1055 = vmul.f32 %v659, %v1042
      %v1056 = vmul.f32 %v660, %v1042
      %v1057 = vmul.f32 %v661, %v1042
      %v1058 = vmul.f32 %v662, %v1042
      %v1059 = vadd.f32 %v1023, %v1043
      %v1060 = vadd.f32 %v1024, %v1044
      %v1061 = vadd.f32 %v1025, %v1045
      %v1062 = vadd.f32 %v1026, %v1046
      %v1063 = vadd.f32 %v1027, %v1047
      %v1064 = vadd.f32 %v1028, %v1048
      %v1065 = vadd.f32 %v1029, %v1049
      %v1066 = vadd.f32 %v1030, %v1050
      %v1067 = vadd.f32 %v1031, %v1051
      %v1068 = vadd.f32 %v1032, %v1052
      %v1069 = vadd.f32 %v1033, %v1053
      %v1070 = vadd.f32 %v1034, %v1054
      %v1071 = vadd.f32 %v1035, %v1055
      %v1072 = vadd.f32 %v1036, %v1056
      %v1073 = vadd.f32 %v1037, %v1057
      %v1074 = vadd.f32 %v1038, %v1058
      %v1075 = vlaneseq
      %v1076 = vshrl.u32 %v1075, 7
      %v1077 = vsub.s32 2, %v1076
      %v1078 = vrot.slane %v802, %v1077
      %v1079 = vmul.f32 %v784, %v1078
      %v1080 = vmul.f32 %v785, %v1078
      %v1081 = vmul.f32 %v786, %v1078
      %v1082 = vmul.f32 %v787, %v1078
      %v1083 = vmul.f32 %v788, %v1078
      %v1084 = vmul.f32 %v789, %v1078
      %v1085 = vmul.f32 %v790, %v1078
      %v1086 = vmul.f32 %v791, %v1078
      %v1087 = vmul.f32 %v792, %v1078
      %v1088 = vmul.f32 %v793, %v1078
      %v1089 = vmul.f32 %v794, %v1078
      %v1090 = vmul.f32 %v795, %v1078
      %v1091 = vmul.f32 %v796, %v1078
      %v1092 = vmul.f32 %v797, %v1078
      %v1093 = vmul.f32 %v798, %v1078
      %v1094 = vmul.f32 %v799, %v1078
      %v1095 = vadd.f32 %v1059, %v1079
      %v1096 = vadd.f32 %v1060, %v1080
      %v1097 = vadd.f32 %v1061, %v1081
      %v1098 = vadd.f32 %v1062, %v1082
      %v1099 = vadd.f32 %v1063, %v1083
      %v1100 = vadd.f32 %v1064, %v1084
      %v1101 = vadd.f32 %v1065, %v1085
      %v1102 = vadd.f32 %v1066, %v1086
      %v1103 = vadd.f32 %v1067, %v1087
      %v1104 = vadd.f32 %v1068, %v1088
      %v1105 = vadd.f32 %v1069, %v1089
      %v1106 = vadd.f32 %v1070, %v1090
      %v1107 = vadd.f32 %v1071, %v1091
      %v1108 = vadd.f32 %v1072, %v1092
      %v1109 = vadd.f32 %v1073, %v1093
      %v1110 = vadd.f32 %v1074, %v1094
      %v1111 = vld [vmem:[%s4] sm:$0x1]
      %v1113 = vlaneseq
      %v1114 = vshrl.u32 %v1113, 7
      %v1115 = vsub.s32 0, %v1114
      %v1116 = vrot.slane %v1111, %v1115
      %v1118 = vadd.f32 %v1095, %v1116
      %v1119 = vadd.f32 %v1096, %v1116
      %v1120 = vadd.f32 %v1097, %v1116
      %v1121 = vadd.f32 %v1098, %v1116
      %v1122 = vadd.f32 %v1099, %v1116
      %v1123 = vadd.f32 %v1100, %v1116
      %v1124 = vadd.f32 %v1101, %v1116
      %v1125 = vadd.f32 %v1102, %v1116
      %v1126 = vadd.f32 %v1103, %v1116
      %v1127 = vadd.f32 %v1104, %v1116
      %v1128 = vadd.f32 %v1105, %v1116
      %v1129 = vadd.f32 %v1106, %v1116
      %v1130 = vadd.f32 %v1107, %v1116
      %v1131 = vadd.f32 %v1108, %v1116
      %v1132 = vadd.f32 %v1109, %v1116
      %v1133 = vadd.f32 %v1110, %v1116
      %v1134 = vmax.f32 %v1118, 0.0
      %v1135 = vmax.f32 %v1119, 0.0
      %v1136 = vmax.f32 %v1120, 0.0
      %v1137 = vmax.f32 %v1121, 0.0
      %v1138 = vmax.f32 %v1122, 0.0
      %v1139 = vmax.f32 %v1123, 0.0
      %v1140 = vmax.f32 %v1124, 0.0
      %v1141 = vmax.f32 %v1125, 0.0
      %v1142 = vmax.f32 %v1126, 0.0
      %v1143 = vmax.f32 %v1127, 0.0
      %v1144 = vmax.f32 %v1128, 0.0
      %v1145 = vmax.f32 %v1129, 0.0
      %v1146 = vmax.f32 %v1130, 0.0
      %v1147 = vmax.f32 %v1131, 0.0
      %v1148 = vmax.f32 %v1132, 0.0
      %v1149 = vmax.f32 %v1133, 0.0
      %v1150 = vmin.f32 %v1134, 6.0
      %v1151 = vmin.f32 %v1135, 6.0
      %v1152 = vmin.f32 %v1136, 6.0
      %v1153 = vmin.f32 %v1137, 6.0
      %v1154 = vmin.f32 %v1138, 6.0
      %v1155 = vmin.f32 %v1139, 6.0
      %v1156 = vmin.f32 %v1140, 6.0
      %v1157 = vmin.f32 %v1141, 6.0
      %v1158 = vmin.f32 %v1142, 6.0
      %v1159 = vmin.f32 %v1143, 6.0
      %v1160 = vmin.f32 %v1144, 6.0
      %v1161 = vmin.f32 %v1145, 6.0
      %v1162 = vmin.f32 %v1146, 6.0
      %v1163 = vmin.f32 %v1147, 6.0
      %v1164 = vmin.f32 %v1148, 6.0
      %v1165 = vmin.f32 %v1149, 6.0
      %v1166 = vpack.c.bf16 %v1151, %v1150
      %v1167 = vpack.c.bf16 %v1153, %v1152
      %v1168 = vpack.c.bf16 %v1155, %v1154
      %v1169 = vpack.c.bf16 %v1157, %v1156
      %v1170 = vpack.c.bf16 %v1159, %v1158
      %v1171 = vpack.c.bf16 %v1161, %v1160
      %v1172 = vpack.c.bf16 %v1163, %v1162
      %v1173 = vpack.c.bf16 %v1165, %v1164
      %v1174 = vld [vmem:[%s5] sm:$0xf]
      %v1175 = vld [vmem:[%s6] sm:$0x1]
      %v1177 = vlaneseq
      %v1178 = vshrl.u32 %v1177, 7
      %v1179 = vsub.s32 0, %v1178
      %v1180 = vrot.slane %v1175, %v1179
      %vm1182 = vcmask 64512
      %v1184 = vsel %vm1182, %v1166, 0
      %v1187 = vsel %vm1182, %v1167, 0
      %v1190 = vsel %vm1182, %v1168, 0
      %v1193 = vsel %vm1182, %v1169, 0
      %v1196 = vsel %vm1182, %v1170, 0
      %v1199 = vsel %vm1182, %v1171, 0
      %v1202 = vsel %vm1182, %v1172, 0
      %v1205 = vsel %vm1182, %v1173, 0
      %vm1207 = vcmask 1043456
      %v1209 = vsel %vm1207, %v1174, 0
      %1211 = vmatprep.subr.bf16.mxu0 0
      %1212 = vmatpush1.bf16.msra.mxu0 %v1209
      %1213 = vmatprep.subr.bf16.mxu0 0
      %1214 = vmatpush1.bf16.msra.mxu0 0
      %1215 = vmatprep.subr.bf16.mxu0 0
      %1216 = vmatpush1.bf16.msra.mxu0 0
      %1217 = vmatprep.subr.bf16.mxu0 0
      %1218 = vmatpush1.bf16.msra.mxu0 0
      %1219 = vmatprep.subr.bf16.mxu0 0
      %1220 = vmatpush1.bf16.msra.mxu0 0
      %1221 = vmatprep.subr.bf16.mxu0 0
      %1222 = vmatpush1.bf16.msra.mxu0 0
      %1223 = vmatprep.subr.bf16.mxu0 0
      %1224 = vmatpush1.bf16.msra.mxu0 0
      %1225 = vmatprep.subr.bf16.mxu0 0
      %1226 = vmatpush1.bf16.msra.mxu0 0
      %1227 = vmatprep.subr.bf16.mxu0 0
      %1228 = vmatpush1.bf16.msra.mxu0 0
      %1229 = vmatprep.subr.bf16.mxu0 0
      %1230 = vmatpush1.bf16.msra.mxu0 0
      %1231 = vmatprep.subr.bf16.mxu0 0
      %1232 = vmatpush1.bf16.msra.mxu0 0
      %1233 = vmatprep.subr.bf16.mxu0 0
      %1234 = vmatpush1.bf16.msra.mxu0 0
      %1235 = vmatprep.subr.bf16.mxu0 0
      %1236 = vmatpush1.bf16.msra.mxu0 0
      %1237 = vmatprep.subr.bf16.mxu0 0
      %1238 = vmatpush1.bf16.msra.mxu0 0
      %1239 = vmatprep.subr.bf16.mxu0 0
      %1240 = vmatpush1.bf16.msra.mxu0 0
      %1241 = vmatprep.subr.bf16.mxu0 0
      %1242 = vmatpush1.bf16.msra.mxu0 0
      %1243 = vmatprep.mubr.bf16.mxu0 0
      %1244 = vmatmul.mubr.bf16.gmra.mrb[0].mxu0 %v1184
      %v1245 = vpop.f32.mrb[0].mxu0
      %v1246 = vadd.f32 %v1180, %v1245
      %v1247 = vpop.f32.mrb[0].mxu0
      %v1248 = vpop.f32.mrb[0].mxu0
      %v1249 = vadd.f32 %v1180, %v1248
      %v1250 = vpop.f32.mrb[0].mxu0
      %1251 = vmatprep.mubr.bf16.mxu0 0
      %1252 = vmatmul.mubr.bf16.gmra.mrb[0].mxu0 %v1187
      %v1253 = vpop.f32.mrb[0].mxu0
      %v1254 = vadd.f32 %v1180, %v1253
      %v1255 = vpop.f32.mrb[0].mxu0
      %v1256 = vpop.f32.mrb[0].mxu0
      %v1257 = vadd.f32 %v1180, %v1256
      %v1258 = vpop.f32.mrb[0].mxu0
      %1259 = vmatprep.mubr.bf16.mxu0 0
      %1260 = vmatmul.mubr.bf16.gmra.mrb[0].mxu0 %v1190
      %v1261 = vpop.f32.mrb[0].mxu0
      %v1262 = vadd.f32 %v1180, %v1261
      %v1263 = vpop.f32.mrb[0].mxu0
      %v1264 = vpop.f32.mrb[0].mxu0
      %v1265 = vadd.f32 %v1180, %v1264
      %v1266 = vpop.f32.mrb[0].mxu0
      %1267 = vmatprep.mubr.bf16.mxu0 0
      %1268 = vmatmul.mubr.bf16.gmra.mrb[0].mxu0 %v1193
      %v1269 = vpop.f32.mrb[0].mxu0
      %v1270 = vadd.f32 %v1180, %v1269
      %v1271 = vpop.f32.mrb[0].mxu0
      %v1272 = vpop.f32.mrb[0].mxu0
      %v1273 = vadd.f32 %v1180, %v1272
      %v1274 = vpop.f32.mrb[0].mxu0
      %1275 = vmatprep.mubr.bf16.mxu0 0
      %1276 = vmatmul.mubr.bf16.gmra.mrb[0].mxu0 %v1196
      %v1277 = vpop.f32.mrb[0].mxu0
      %v1278 = vadd.f32 %v1180, %v1277
      %v1279 = vpop.f32.mrb[0].mxu0
      %v1280 = vpop.f32.mrb[0].mxu0
      %v1281 = vadd.f32 %v1180, %v1280
      %v1282 = vpop.f32.mrb[0].mxu0
      %1283 = vmatprep.mubr.bf16.mxu0 0
      %1284 = vmatmul.mubr.bf16.gmra.mrb[0].mxu0 %v1199
      %v1285 = vpop.f32.mrb[0].mxu0
      %v1286 = vadd.f32 %v1180, %v1285
      %v1287 = vpop.f32.mrb[0].mxu0
      %v1288 = vpop.f32.mrb[0].mxu0
      %v1289 = vadd.f32 %v1180, %v1288
      %v1290 = vpop.f32.mrb[0].mxu0
      %1291 = vmatprep.mubr.bf16.mxu0 0
      %1292 = vmatmul.mubr.bf16.gmra.mrb[0].mxu0 %v1202
      %v1293 = vpop.f32.mrb[0].mxu0
      %v1294 = vadd.f32 %v1180, %v1293
      %v1295 = vpop.f32.mrb[0].mxu0
      %v1296 = vpop.f32.mrb[0].mxu0
      %v1297 = vadd.f32 %v1180, %v1296
      %v1298 = vpop.f32.mrb[0].mxu0
      %1299 = vmatprep.mubr.bf16.mxu0 0
      %1300 = vmatmul.mubr.bf16.gmra.mrb[0].mxu0 %v1205
      %v1301 = vpop.f32.mrb[0].mxu0
      %v1302 = vadd.f32 %v1180, %v1301
      %v1303 = vpop.f32.mrb[0].mxu0
      %v1304 = vpop.f32.mrb[0].mxu0
      %v1305 = vadd.f32 %v1180, %v1304
      %v1306 = vpop.f32.mrb[0].mxu0
      %1307 = vdwg.mxu0
      %v1308 = vunpack.c.l.bf16 %v318
      %v1309 = vunpack.c.l.bf16 %v319
      %v1310 = vunpack.c.l.bf16 %v320
      %v1311 = vunpack.c.l.bf16 %v321
      %v1312 = vunpack.c.l.bf16 %v322
      %v1313 = vunpack.c.l.bf16 %v323
      %v1314 = vunpack.c.l.bf16 %v324
      %v1315 = vunpack.c.l.bf16 %v325
      %v1316 = vunpack.c.l.bf16 %v326
      %v1317 = vunpack.c.l.bf16 %v327
      %v1318 = vunpack.c.l.bf16 %v328
      %v1319 = vunpack.c.l.bf16 %v329
      %v1320 = vunpack.c.l.bf16 %v330
      %v1321 = vunpack.c.l.bf16 %v331
      %v1322 = vunpack.c.l.bf16 %v332
      %v1323 = vunpack.c.l.bf16 %v333
      %v1324 = vadd.f32 %v1246, %v1308
      %v1325 = vadd.f32 %v1249, %v1309
      %v1326 = vadd.f32 %v1254, %v1310
      %v1327 = vadd.f32 %v1257, %v1311
      %v1328 = vadd.f32 %v1262, %v1312
      %v1329 = vadd.f32 %v1265, %v1313
      %v1330 = vadd.f32 %v1270, %v1314
      %v1331 = vadd.f32 %v1273, %v1315
      %v1332 = vadd.f32 %v1278, %v1316
      %v1333 = vadd.f32 %v1281, %v1317
      %v1334 = vadd.f32 %v1286, %v1318
      %v1335 = vadd.f32 %v1289, %v1319
      %v1336 = vadd.f32 %v1294, %v1320
      %v1337 = vadd.f32 %v1297, %v1321
      %v1338 = vadd.f32 %v1302, %v1322
      %v1339 = vadd.f32 %v1305, %v1323
      %v1340 = vpack.c.bf16 %v1325, %v1324
      %v1341 = vpack.c.bf16 %v1327, %v1326
      %v1342 = vpack.c.bf16 %v1329, %v1328
      %v1343 = vpack.c.bf16 %v1331, %v1330
      %v1344 = vpack.c.bf16 %v1333, %v1332
      %v1345 = vpack.c.bf16 %v1335, %v1334
      %v1346 = vpack.c.bf16 %v1337, %v1336
      %v1347 = vpack.c.bf16 %v1339, %v1338
      %v1356 = vunpack.c.l.b16 %v1340
      %v1357 = vunpack.c.h.b16 %v1340
      %v1358 = vunpack.c.l.b16 %v1341
      %v1359 = vunpack.c.h.b16 %v1341
      %v1360 = vunpack.c.l.b16 %v1342
      %v1361 = vunpack.c.h.b16 %v1342
      %v1362 = vunpack.c.l.b16 %v1343
      %v1363 = vunpack.c.h.b16 %v1343
      %v1364 = vunpack.c.l.b16 %v1344
      %v1365 = vunpack.c.h.b16 %v1344
      %v1366 = vunpack.c.l.b16 %v1345
      %v1367 = vunpack.c.h.b16 %v1345
      %v1368 = vunpack.c.l.b16 %v1346
      %v1369 = vunpack.c.h.b16 %v1346
      %v1370 = vunpack.c.l.b16 %v1347
      %v1371 = vunpack.c.h.b16 %v1347
      %v1372 = vpack.c.b16 %v1356, %v1356
      %v1373 = vpack.c.b16 %v1357, %v1357
      %v1374 = vpack.c.b16 %v1358, %v1358
      %v1375 = vpack.c.b16 %v1359, %v1359
      %v1376 = vpack.c.b16 %v1360, %v1360
      %v1377 = vpack.c.b16 %v1361, %v1361
      %v1378 = vpack.c.b16 %v1362, %v1362
      %v1379 = vpack.c.b16 %v1363, %v1363
      %v1380 = vpack.c.b16 %v1364, %v1364
      %v1381 = vpack.c.b16 %v1365, %v1365
      %v1382 = vpack.c.b16 %v1366, %v1366
      %v1383 = vpack.c.b16 %v1367, %v1367
      %v1384 = vpack.c.b16 %v1368, %v1368
      %v1385 = vpack.c.b16 %v1369, %v1369
      %v1386 = vpack.c.b16 %v1370, %v1370
      %v1387 = vpack.c.b16 %v1371, %v1371
      %vm1404 = vcmask 27648
      %1405 = vst.msk [vmem:[%s314] sm:$0xf] %vm1404, %v1372
      %1406 = vst.msk [vmem:[%s314 + $0x4] sm:$0xf] %vm1404, %v1373
      %1407 = vst.msk [vmem:[%s314 + $0x8] sm:$0xf] %vm1404, %v1374
      %1408 = vst.msk [vmem:[%s314 + $0xc] sm:$0xf] %vm1404, %v1375
      %1409 = vst.msk [vmem:[%s314 + $0x10] sm:$0xf] %vm1404, %v1376
      %1410 = vst.msk [vmem:[%s314 + $0x14] sm:$0xf] %vm1404, %v1377
      %1411 = vst.msk [vmem:[%s314 + $0x18] sm:$0xf] %vm1404, %v1378
      %1412 = vst.msk [vmem:[%s314 + $0x1c] sm:$0xf] %vm1404, %v1379
      %1413 = vst.msk [vmem:[%s314 + $0x20] sm:$0xf] %vm1404, %v1380
      %1414 = vst.msk [vmem:[%s314 + $0x24] sm:$0xf] %vm1404, %v1381
      %1415 = vst.msk [vmem:[%s314 + $0x28] sm:$0xf] %vm1404, %v1382
      %1416 = vst.msk [vmem:[%s314 + $0x2c] sm:$0xf] %vm1404, %v1383
      %1417 = vst.msk [vmem:[%s314 + $0x30] sm:$0xf] %vm1404, %v1384
      %1418 = vst.msk [vmem:[%s314 + $0x34] sm:$0xf] %vm1404, %v1385
      %1419 = vst.msk [vmem:[%s314 + $0x38] sm:$0xf] %vm1404, %v1386
      %1420 = vst.msk [vmem:[%s314 + $0x3c] sm:$0xf] %vm1404, %v1387
      %p1421 = scmp.lt.s32.totalorder %s22, 1
      %s1422 = scalar_select %p1421, %s22, 1
      %p1423 = scmp.lt.s32.totalorder %s23, 1
      %s1424 = scalar_select %p1423, %s23, 1
      %s1425 = smul.addr %s1424, 16
      %s1426 = smul.addr %s1422, 32
      %s1427 = sadd.s32 %s1425, %s1426
      %s1428 = smul.addr %s1427, 4
      %s1429 = scalar_lea.vmem %s7, %s1428
      // Predicated region
      $region49: #{tpu_custom_call.1} parent=47 // pred_check
        %p1430 = pneg %p204
      $region50: #{tpu_custom_call.1} parent=47 // pred_check_branch
        %1432 = sbr.rel (%p1430) target = $region52
      $region51: #{tpu_custom_call.1} parent=47 // pred_region
        _
      $region52: #{tpu_custom_call.1} parent=47 // pred_fallthru
        _
    $region48: #{tpu_custom_call.1} parent=5 // pred_fallthru
      _
    %p1433 = scmp.le.s32.totalorder 2, %s13
    // Predicated region
    $region53: #{tpu_custom_call.1} parent=5 // pred_check
      %p1434 = pneg %p1433
    $region54: #{tpu_custom_call.1} parent=5 // pred_check_branch
      %1436 = sbr.rel (%p1434) target = $region56
    $region55: #{tpu_custom_call.1} parent=5 // pred_region
      %s1437 = ssub.s32 %s13, 2
      // Predicated region
      $region57: #{tpu_custom_call.1} parent=55 // pred_check
        %p1438 = pneg %p210
      $region58: #{tpu_custom_call.1} parent=55 // pred_check_branch
        %1440 = sbr.rel (%p1438) target = $region60
      $region59: #{tpu_custom_call.1} parent=55 // pred_region
        %p1441 = scmp.lt.s32.totalorder %s24, 1
        %s1442 = scalar_select %p1441, %s24, 1
        %p1443 = scmp.lt.s32.totalorder %s25, 1
        %s1444 = scalar_select %p1443, %s25, 1
        %s1445 = smul.addr %s1444, 16
        %s1446 = smul.addr %s1442, 32
        %s1447 = sadd.s32 %s1445, %s1446
        %s1448 = smul.addr %s1447, 4
        %s1449 = scalar_lea.vmem %s7, %s1448
      $region60: #{tpu_custom_call.1} parent=55 // pred_fallthru
        _
    $region56: #{tpu_custom_call.1} parent=5 // pred_fallthru
      _
  $region6: #{tpu_custom_call.1} parent=0 // loop_footer
    %s17 = sadd.s32 1, %s13
  $region7: #{tpu_custom_call.1} parent=0 // loop_footer_branch
    %12 = sbr.rel target = $region3
  $region8: #{tpu_custom_call.1} parent=0 // loop_exit
    _

</llo_original>
